<compile_context>
chip_gen: v7x
topology: tpu7x:2x2x1
jax: 0.10.0
libtpu: 0.0.40
codegen_flags: <defaults>
</compile_context>

<pallas_src>
import functools

import jax
import jax.numpy as jnp
import numpy as np
from jax.experimental import pallas as pl
from jax.experimental.pallas import tpu as pltpu


def _round_up(v, m):
    return ((v + m - 1) // m) * m


def _conv_sigmoid(avg, mx, plane_ref, w2_ref, colmask_ref, *, H, W, K, PAD, OFF):
    """7x7 zero-padded conv on the flat (avg, max) planes + sigmoid.

    avg, mx     : (1, HW) f32 values
    plane_ref   : VMEM f32[2, PADW] padded scratch (interior at lane-aligned OFF)
    w2_ref      : VMEM f32[2, K*K]   conv weight, row c = input channel c
    colmask_ref : VMEM f32[K, HW]    per-dx column-validity masks (0/1)
    """
    HW = H * W
    f32 = jnp.float32
    PADW = plane_ref.shape[1]

    # Zero only the halo lanes (interior fully overwritten); done every call so
    # it is safe under megacore sharding. Interior store is lane-aligned.
    plane_ref[:, :OFF] = jnp.zeros((2, OFF), f32)
    plane_ref[:, OFF + HW:] = jnp.zeros((2, PADW - OFF - HW), f32)
    plane_ref[:, OFF:OFF + HW] = jnp.concatenate([avg, mx], axis=0)

    # Tap (dy, dx) -> contiguous lane window at flat offset t = (dy-PAD)*W+(dx-PAD).
    # Vertical out-of-range taps read the zero halo; horizontal wrap-around is
    # removed by the per-dx column mask, applied once per dx (hoisted).
    acc2 = jnp.zeros((2, HW), f32)
    for dx in range(K):
        acc_dx = jnp.zeros((2, HW), f32)
        for dy in range(K):
            idx = dy * K + dx
            t = (dy - PAD) * W + (dx - PAD)
            win = plane_ref[:, OFF + t:OFF + t + HW]          # (2, HW): both channels
            acc_dx = acc_dx + w2_ref[:, idx:idx + 1] * win    # per-row weight
        acc2 = acc2 + acc_dx * colmask_ref[dx:dx + 1, :]
    conv = jnp.sum(acc2, axis=0, keepdims=True)               # (1, HW) sublane-sum
    return jax.nn.sigmoid(conv)


# ----------------------------- fused path ----------------------------------
def _fused_kernel(w2_ref, colmask_ref, x_ref, o_ref, plane_ref, *,
                  C, H, W, K, PAD, CB, OFF, apply_dtype, out_dtype):
    """One batch element per grid step; x block is (C, H*W), lane-dense."""
    HW = H * W
    f32 = jnp.float32
    n_full = C // CB
    rem = C - n_full * CB

    # ---- pass 1: channel mean & max, chunked over sublane groups -----------
    def stats(c0, cb):
        v = x_ref[pl.ds(c0, cb), :].astype(f32)
        return (jnp.sum(v, axis=0, keepdims=True),
                jnp.max(v, axis=0, keepdims=True))

    s_acc = jnp.zeros((1, HW), f32)
    m_acc = jnp.full((1, HW), -jnp.inf, f32)
    if n_full > 0:
        def body(i, carry):
            s, m = carry
            cs, cm = stats(pl.multiple_of(i * CB, CB), CB)
            return s + cs, jnp.maximum(m, cm)
        s_acc, m_acc = jax.lax.fori_loop(0, n_full, body, (s_acc, m_acc),
                                         unroll=2)
    if rem > 0:
        cs, cm = stats(n_full * CB, rem)
        s_acc = s_acc + cs
        m_acc = jnp.maximum(m_acc, cm)

    avg = s_acc * (1.0 / C)
    gate = _conv_sigmoid(avg, m_acc, plane_ref, w2_ref, colmask_ref,
                         H=H, W=W, K=K, PAD=PAD, OFF=OFF)

    # ---- pass 2: apply gate (broadcast hoisted, apply in input dtype) ------
    gate_c = gate.astype(apply_dtype)
    if n_full > 0:
        gate_b = jnp.broadcast_to(gate_c, (CB, HW))           # single broadcast

        def body2(i, carry):
            c0 = pl.multiple_of(i * CB, CB)
            v = x_ref[pl.ds(c0, CB), :].astype(apply_dtype)
            o_ref[pl.ds(c0, CB), :] = (v * gate_b).astype(out_dtype)
            return carry
        jax.lax.fori_loop(0, n_full, body2, 0, unroll=2)
    if rem > 0:
        c0 = n_full * CB
        v = x_ref[pl.ds(c0, rem), :].astype(apply_dtype)
        o_ref[pl.ds(c0, rem), :] = (v * gate_c).astype(out_dtype)


# ----------------------- split (channel-tiled) path -------------------------
def _gate_kernel(w2_ref, colmask_ref, x_ref, g_ref, sum_ref, max_ref, plane_ref,
                 *, C, H, W, K, PAD, CT, GB, OFF):
    """grid = (B, num_channel_tiles); accumulate mean/max, finalize gate."""
    HW = H * W
    f32 = jnp.float32
    kc = pl.program_id(1)
    base = kc * CT

    @pl.when(kc == 0)
    def _():
        sum_ref[...] = jnp.zeros((1, HW), f32)
        max_ref[...] = jnp.full((1, HW), -jnp.inf, f32)

    n_full = CT // GB
    rem = CT - n_full * GB
    row = jax.lax.broadcasted_iota(jnp.int32, (GB, 1), 0)

    def chunk(c0, cb, rows):
        v = x_ref[pl.ds(c0, cb), :].astype(f32)
        valid = (base + c0 + rows) < C        # mask padded rows of edge block
        s = jnp.sum(jnp.where(valid, v, 0.0), axis=0, keepdims=True)
        m = jnp.max(jnp.where(valid, v, -jnp.inf), axis=0, keepdims=True)
        return s, m

    s_blk = jnp.zeros((1, HW), f32)
    m_blk = jnp.full((1, HW), -jnp.inf, f32)
    if n_full > 0:
        def body(i, carry):
            s, m = carry
            cs, cm = chunk(pl.multiple_of(i * GB, GB), GB, row)
            return s + cs, jnp.maximum(m, cm)
        s_blk, m_blk = jax.lax.fori_loop(0, n_full, body, (s_blk, m_blk),
                                         unroll=2)
    if rem > 0:
        rrow = jax.lax.broadcasted_iota(jnp.int32, (rem, 1), 0)
        cs, cm = chunk(n_full * GB, rem, rrow)
        s_blk = s_blk + cs
        m_blk = jnp.maximum(m_blk, cm)

    sum_ref[...] = sum_ref[...] + s_blk
    max_ref[...] = jnp.maximum(max_ref[...], m_blk)

    @pl.when(kc == pl.num_programs(1) - 1)
    def _():
        avg = sum_ref[...] * (1.0 / C)
        g_ref[...] = _conv_sigmoid(avg, max_ref[...], plane_ref, w2_ref,
                                   colmask_ref, H=H, W=W, K=K, PAD=PAD, OFF=OFF)


def _apply_kernel(g_ref, x_ref, o_ref, *, CT, HW, apply_dtype, out_dtype):
    gate = jnp.broadcast_to(g_ref[...].astype(apply_dtype), (CT, HW))
    o_ref[...] = (x_ref[...].astype(apply_dtype) * gate).astype(out_dtype)


# ------------------------------ wrapper -------------------------------------
def spatial_attention(x, weight, *, force_split=False, donate_x=False):
    """x: [B, C, H, W] (NCHW). weight: [1, 2, K, K] (OIHW, no bias)."""
    B, C, H, W = x.shape
    K = weight.shape[-1]
    PAD = (K - 1) // 2
    HW = H * W
    KK = K * K
    MAXS = PAD * W + PAD                     # largest |flat tap offset|
    OFF = _round_up(max(MAXS, 1), 128)       # lane-aligned left halo
    PADW = OFF + _round_up(HW + MAXS, 128)   # padded plane width (lane multiple)

    itemsize = int(jnp.dtype(x.dtype).itemsize)
    # Apply pass in the input dtype for sub-32-bit inputs (bf16 VALU on
    # v6e/v7x; on v5e the compiler widens internally). Reductions stay f32.
    apply_dtype = x.dtype if itemsize < 4 else jnp.float32
    out_dtype = x.dtype

    w2 = weight.reshape(2, KK).astype(jnp.float32)            # (2, K*K)

    # Per-dx column-validity masks, (K, HW), values 0/1 (static, DMA'd once:
    # its block index is constant so Pallas does not refetch per grid step).
    xs = np.arange(HW) % W
    colmask = np.stack(
        [((xs + (dx - PAD) >= 0) & (xs + (dx - PAD) < W)).astype(np.float32)
         for dx in range(K)], axis=0)
    colmask = jnp.asarray(colmask)

    x_flat = x.reshape(B, C, HW)                              # lane-dense view

    # dtype/HW-aware channel chunk: full sublane packing, <= ~16 vregs live.
    sub = 8 * max(1, 4 // itemsize)
    CB = sub
    while CB * 2 * HW * 4 <= (64 << 10) and CB * 2 <= 256:
        CB *= 2

    # ---- generation-aware VMEM budget (conservative fallback = v7x 64 MiB) -
    try:
        vmem_cap = int(pltpu.get_tpu_info().vmem_capacity_bytes)
    except Exception:
        vmem_cap = 64 << 20
    budget = max(16 << 20, vmem_cap - (20 << 20))   # ~44 MiB v7x, ~108 MiB v5e/v6e

    fixed = 2 * PADW * 4 + K * HW * 4 + 2 * KK * 4 + (2 << 20)
    blk = C * HW * itemsize
    fused_need = 4 * blk + fixed                     # dbl-buffered in + out

    if not force_split and fused_need <= budget:
        # -------- fused path: one (C, HW) slab per batch, x read/written once
        kernel = functools.partial(
            _fused_kernel, C=C, H=H, W=W, K=K, PAD=PAD, CB=CB, OFF=OFF,
            apply_dtype=apply_dtype, out_dtype=out_dtype)
        vmem_limit = int(min(budget, max(fused_need + (4 << 20), 32 << 20)))
        out_flat = pl.pallas_call(
            kernel,
            out_shape=jax.ShapeDtypeStruct((B, C, HW), out_dtype),
            grid_spec=pltpu.PrefetchScalarGridSpec(
                num_scalar_prefetch=0,
                grid=(B,),
                in_specs=[
                    pl.BlockSpec((2, KK), lambda b: (0, 0)),
                    pl.BlockSpec((K, HW), lambda b: (0, 0)),
                    pl.BlockSpec((None, C, HW), lambda b: (b, 0, 0)),
                ],
                out_specs=pl.BlockSpec((None, C, HW), lambda b: (b, 0, 0)),
                scratch_shapes=[pltpu.VMEM((2, PADW), jnp.float32)],
            ),
            compiler_params=pltpu.CompilerParams(
                dimension_semantics=("parallel",),
                vmem_limit_bytes=vmem_limit,
            ),
            input_output_aliases=({2: 0} if donate_x else {}),
        )(w2, colmask, x_flat)
        return out_flat.reshape(B, C, H, W)

    # -------- split path: channel-tiled gate reduce + apply (more pipeline
    # steps per batch, bounded per-step VMEM; x is read twice from HBM).
    def _pick_tile(nbuf):
        t = sub
        while (t * 2 < C
               and (t * 2) * HW * itemsize <= (4 << 20)
               and 2 * nbuf * (t * 2) * HW * itemsize + fixed <= budget):
            t *= 2
        return min(t, C)

    CT = _pick_tile(1)
    NC = -(-C // CT)
    CT2 = _pick_tile(2)
    NC2 = -(-C // CT2)
    GB = min(CB, CT)

    gate_kernel = functools.partial(
        _gate_kernel, C=C, H=H, W=W, K=K, PAD=PAD, CT=CT, GB=GB, OFF=OFF)
    gate_vmem = int(min(budget,
                        max(2 * CT * HW * itemsize + fixed + (4 << 20), 32 << 20)))
    gates = pl.pallas_call(
        gate_kernel,
        out_shape=jax.ShapeDtypeStruct((B, 1, HW), jnp.float32),
        grid_spec=pltpu.PrefetchScalarGridSpec(
            num_scalar_prefetch=0,
            grid=(B, NC),
            in_specs=[
                pl.BlockSpec((2, KK), lambda b, kc: (0, 0)),
                pl.BlockSpec((K, HW), lambda b, kc: (0, 0)),
                pl.BlockSpec((None, CT, HW), lambda b, kc: (b, kc, 0)),
            ],
            out_specs=pl.BlockSpec((None, 1, HW), lambda b, kc: (b, 0, 0)),
            scratch_shapes=[
                pltpu.VMEM((1, HW), jnp.float32),    # running sum
                pltpu.VMEM((1, HW), jnp.float32),    # running max
                pltpu.VMEM((2, PADW), jnp.float32),  # padded gate planes
            ],
        ),
        compiler_params=pltpu.CompilerParams(
            dimension_semantics=("parallel", "arbitrary"),
            vmem_limit_bytes=gate_vmem,
        ),
    )(w2, colmask, x_flat)

    apply_kernel = functools.partial(
        _apply_kernel, CT=CT2, HW=HW, apply_dtype=apply_dtype, out_dtype=out_dtype)
    apply_vmem = int(min(budget,
                         max(4 * CT2 * HW * itemsize + (4 << 20), 32 << 20)))
    out_flat = pl.pallas_call(
        apply_kernel,
        out_shape=jax.ShapeDtypeStruct((B, C, HW), out_dtype),
        grid_spec=pltpu.PrefetchScalarGridSpec(
            num_scalar_prefetch=0,
            grid=(B, NC2),
            in_specs=[
                pl.BlockSpec((None, 1, HW), lambda b, kc: (b, 0, 0)),
                pl.BlockSpec((None, CT2, HW), lambda b, kc: (b, kc, 0)),
            ],
            out_specs=pl.BlockSpec((None, CT2, HW), lambda b, kc: (b, kc, 0)),
        ),
        compiler_params=pltpu.CompilerParams(
            dimension_semantics=("parallel", "parallel"),
            vmem_limit_bytes=apply_vmem,
        ),
        input_output_aliases=({1: 0} if donate_x else {}),
    )(gates, x_flat)
    return out_flat.reshape(B, C, H, W)


def _reference(x, weight):
    """Pure-JAX reference matching the PyTorch forward."""
    avg = jnp.mean(x, axis=1, keepdims=True)
    mx = jnp.max(x, axis=1, keepdims=True)
    feat = jnp.concatenate([avg, mx], axis=1)
    pad = (weight.shape[-1] - 1) // 2
    out = jax.lax.conv_general_dilated(
        feat, weight, window_strides=(1, 1),
        padding=[(pad, pad), (pad, pad)],
        dimension_numbers=("NCHW", "OIHW", "NCHW"),
    )
    return x * jax.nn.sigmoid(out)


if __name__ == "__main__":
    key = jax.random.PRNGKey(0)
    kx, kw, kx2 = jax.random.split(key, 3)

    K = 7
    fan_in = 2 * K * K
    bound = 1.0 / np.sqrt(fan_in)
    weight = jax.random.uniform(kw, (1, 2, K, K), dtype=jnp.float32,
                                minval=-bound, maxval=bound)

    # Small shape consistent with the module (fused path).
    B, C, H, W = 2, 4, 16, 16
    x = jax.random.normal(kx, (B, C, H, W), dtype=jnp.float32)
    y = jax.block_until_ready(spatial_attention(x, weight))
    y_ref = _reference(x, weight)
    assert y.shape == (B, C, H, W)
    assert np.allclose(np.asarray(y), np.asarray(y_ref), atol=1e-4, rtol=1e-4)

    # Exercise the channel-tiled fallback path (incl. a ragged last tile).
    B2, C2 = 2, 20
    x2 = jax.random.normal(kx2, (B2, C2, H, W), dtype=jnp.float32)
    y2 = jax.block_until_ready(spatial_attention(x2, weight, force_split=True))
    y2_ref = _reference(x2, weight)
    assert np.allclose(np.asarray(y2), np.asarray(y2_ref), atol=1e-4, rtol=1e-4)

    print("KERNEL_OK")
</pallas_src>

<mosaic_0001>
module attributes {stable_mosaic.version = 11 : i64} {
  func.func @_fused_kernel(%arg0: i32, %arg1: memref<2x49xf32, #tpu.memory_space<vmem>>, %arg2: memref<7x256xf32, #tpu.memory_space<vmem>>, %arg3: memref<1x4x256xf32, #tpu.memory_space<vmem>>, %arg4: memref<1x4x256xf32, #tpu.memory_space<vmem>>, %arg5: memref<2x512xf32, #tpu.memory_space<vmem>>) attributes {dimension_semantics = [#tpu.dimension_semantics<parallel>], iteration_bounds = array<i64: 2>, scalar_prefetch = 0 : i64, scratch_operands = 1 : i64, tpu.core_type = #tpu.core_type<tc>, window_params = [{pipeline_mode = #tpu.pipeline_mode<synchronous>, transform_indices = @transform_0, window_bounds = array<i64: 2, 49>}, {pipeline_mode = #tpu.pipeline_mode<synchronous>, transform_indices = @transform_1, window_bounds = array<i64: 7, 256>}, {transform_indices = @transform_2, window_bounds = array<i64: 1, 4, 256>}, {transform_indices = @transform_3, window_bounds = array<i64: 1, 4, 256>}]} {
    %cst = arith.constant 0.000000e+00 : f32
    %0 = vector.broadcast %cst : f32 to vector<1x256xf32>
    %cst_0 = arith.constant 0xFF800000 : f32
    %1 = vector.broadcast %cst_0 : f32 to vector<1x256xf32>
    %c0 = arith.constant 0 : index
    %c0_1 = arith.constant 0 : index
    %c0_2 = arith.constant 0 : index
    %2 = vector.load %arg3[%c0, %c0_1, %c0_2] : memref<1x4x256xf32, #tpu.memory_space<vmem>>, vector<1x4x256xf32>
    %3 = vector.shape_cast %2 : vector<1x4x256xf32> to vector<4x256xf32>
    %cst_3 = arith.constant dense<0.000000e+00> : vector<256xf32>
    %4 = vector.multi_reduction <add>, %3, %cst_3 [0] : vector<4x256xf32> to vector<256xf32>
    %5 = vector.shape_cast %4 : vector<256xf32> to vector<1x256xf32>
    %cst_4 = arith.constant dense<0xFF800000> : vector<256xf32>
    %6 = vector.multi_reduction <maximumf>, %3, %cst_4 [0] : vector<4x256xf32> to vector<256xf32>
    %7 = vector.shape_cast %6 : vector<256xf32> to vector<1x256xf32>
    %8 = arith.addf %0, %5 : vector<1x256xf32>
    %9 = arith.maximumf %1, %7 : vector<1x256xf32>
    %cst_5 = arith.constant 2.500000e-01 : f32
    %10 = vector.broadcast %cst_5 : f32 to vector<1x256xf32>
    %11 = arith.mulf %8, %10 : vector<1x256xf32>
    %cst_6 = arith.constant 0.000000e+00 : f32
    %12 = vector.broadcast %cst_6 : f32 to vector<2x128xf32>
    %c0_7 = arith.constant 0 : index
    %c0_8 = arith.constant 0 : index
    %13 = vector.load %arg5[%c0_7, %c0_8] : memref<2x512xf32, #tpu.memory_space<vmem>>, vector<2x128xf32>
    tpu.vector_store %arg5[%c0_7, %c0_8], %12 {strides = array<i32>} : memref<2x512xf32, #tpu.memory_space<vmem>>, vector<2x128xf32>,
    %cst_9 = arith.constant 0.000000e+00 : f32
    %14 = vector.broadcast %cst_9 : f32 to vector<2x128xf32>
    %c0_10 = arith.constant 0 : index
    %c384 = arith.constant 384 : index
    %15 = vector.load %arg5[%c0_10, %c384] : memref<2x512xf32, #tpu.memory_space<vmem>>, vector<2x128xf32>
    tpu.vector_store %arg5[%c0_10, %c384], %14 {strides = array<i32>} : memref<2x512xf32, #tpu.memory_space<vmem>>, vector<2x128xf32>,
    %16 = tpu.concatenate %11, %9 in 0 : vector<1x256xf32>, vector<1x256xf32> -> vector<2x256xf32>
    %c0_11 = arith.constant 0 : index
    %c128 = arith.constant 128 : index
    %17 = vector.load %arg5[%c0_11, %c128] : memref<2x512xf32, #tpu.memory_space<vmem>>, vector<2x256xf32>
    tpu.vector_store %arg5[%c0_11, %c128], %16 {strides = array<i32>} : memref<2x512xf32, #tpu.memory_space<vmem>>, vector<2x256xf32>,
    %cst_12 = arith.constant 0.000000e+00 : f32
    %18 = vector.broadcast %cst_12 : f32 to vector<2x256xf32>
    %cst_13 = arith.constant 0.000000e+00 : f32
    %19 = vector.broadcast %cst_13 : f32 to vector<2x256xf32>
    %c0_14 = arith.constant 0 : index
    %c77 = arith.constant 77 : index
    %20 = vector.load %arg5[%c0_14, %c77] : memref<2x512xf32, #tpu.memory_space<vmem>>, vector<2x256xf32>
    %c0_15 = arith.constant 0 : index
    %c0_16 = arith.constant 0 : index
    %21 = vector.load %arg1[%c0_15, %c0_16] : memref<2x49xf32, #tpu.memory_space<vmem>>, vector<2x1xf32>
    %22 = vector.broadcast %21 : vector<2x1xf32> to vector<2x256xf32>
    %23 = arith.mulf %22, %20 : vector<2x256xf32>
    %24 = arith.addf %19, %23 : vector<2x256xf32>
    %c0_17 = arith.constant 0 : index
    %c93 = arith.constant 93 : index
    %25 = vector.load %arg5[%c0_17, %c93] : memref<2x512xf32, #tpu.memory_space<vmem>>, vector<2x256xf32>
    %c0_18 = arith.constant 0 : index
    %c7 = arith.constant 7 : index
    %26 = vector.load %arg1[%c0_18, %c7] : memref<2x49xf32, #tpu.memory_space<vmem>>, vector<2x1xf32>
    %27 = vector.broadcast %26 : vector<2x1xf32> to vector<2x256xf32>
    %28 = arith.mulf %27, %25 : vector<2x256xf32>
    %29 = arith.addf %24, %28 : vector<2x256xf32>
    %c0_19 = arith.constant 0 : index
    %c109 = arith.constant 109 : index
    %30 = vector.load %arg5[%c0_19, %c109] : memref<2x512xf32, #tpu.memory_space<vmem>>, vector<2x256xf32>
    %c0_20 = arith.constant 0 : index
    %c14 = arith.constant 14 : index
    %31 = vector.load %arg1[%c0_20, %c14] : memref<2x49xf32, #tpu.memory_space<vmem>>, vector<2x1xf32>
    %32 = vector.broadcast %31 : vector<2x1xf32> to vector<2x256xf32>
    %33 = arith.mulf %32, %30 : vector<2x256xf32>
    %34 = arith.addf %29, %33 : vector<2x256xf32>
    %c0_21 = arith.constant 0 : index
    %c125 = arith.constant 125 : index
    %35 = vector.load %arg5[%c0_21, %c125] : memref<2x512xf32, #tpu.memory_space<vmem>>, vector<2x256xf32>
    %c0_22 = arith.constant 0 : index
    %c21 = arith.constant 21 : index
    %36 = vector.load %arg1[%c0_22, %c21] : memref<2x49xf32, #tpu.memory_space<vmem>>, vector<2x1xf32>
    %37 = vector.broadcast %36 : vector<2x1xf32> to vector<2x256xf32>
    %38 = arith.mulf %37, %35 : vector<2x256xf32>
    %39 = arith.addf %34, %38 : vector<2x256xf32>
    %c0_23 = arith.constant 0 : index
    %c141 = arith.constant 141 : index
    %40 = vector.load %arg5[%c0_23, %c141] : memref<2x512xf32, #tpu.memory_space<vmem>>, vector<2x256xf32>
    %c0_24 = arith.constant 0 : index
    %c28 = arith.constant 28 : index
    %41 = vector.load %arg1[%c0_24, %c28] : memref<2x49xf32, #tpu.memory_space<vmem>>, vector<2x1xf32>
    %42 = vector.broadcast %41 : vector<2x1xf32> to vector<2x256xf32>
    %43 = arith.mulf %42, %40 : vector<2x256xf32>
    %44 = arith.addf %39, %43 : vector<2x256xf32>
    %c0_25 = arith.constant 0 : index
    %c157 = arith.constant 157 : index
    %45 = vector.load %arg5[%c0_25, %c157] : memref<2x512xf32, #tpu.memory_space<vmem>>, vector<2x256xf32>
    %c0_26 = arith.constant 0 : index
    %c35 = arith.constant 35 : index
    %46 = vector.load %arg1[%c0_26, %c35] : memref<2x49xf32, #tpu.memory_space<vmem>>, vector<2x1xf32>
    %47 = vector.broadcast %46 : vector<2x1xf32> to vector<2x256xf32>
    %48 = arith.mulf %47, %45 : vector<2x256xf32>
    %49 = arith.addf %44, %48 : vector<2x256xf32>
    %c0_27 = arith.constant 0 : index
    %c173 = arith.constant 173 : index
    %50 = vector.load %arg5[%c0_27, %c173] : memref<2x512xf32, #tpu.memory_space<vmem>>, vector<2x256xf32>
    %c0_28 = arith.constant 0 : index
    %c42 = arith.constant 42 : index
    %51 = vector.load %arg1[%c0_28, %c42] : memref<2x49xf32, #tpu.memory_space<vmem>>, vector<2x1xf32>
    %52 = vector.broadcast %51 : vector<2x1xf32> to vector<2x256xf32>
    %53 = arith.mulf %52, %50 : vector<2x256xf32>
    %54 = arith.addf %49, %53 : vector<2x256xf32>
    %c0_29 = arith.constant 0 : index
    %c0_30 = arith.constant 0 : index
    %55 = vector.load %arg2[%c0_29, %c0_30] : memref<7x256xf32, #tpu.memory_space<vmem>>, vector<1x256xf32>
    %56 = vector.broadcast %55 : vector<1x256xf32> to vector<2x256xf32>
    %57 = arith.mulf %54, %56 : vector<2x256xf32>
    %58 = arith.addf %18, %57 : vector<2x256xf32>
    %cst_31 = arith.constant 0.000000e+00 : f32
    %59 = vector.broadcast %cst_31 : f32 to vector<2x256xf32>
    %c0_32 = arith.constant 0 : index
    %c78 = arith.constant 78 : index
    %60 = vector.load %arg5[%c0_32, %c78] : memref<2x512xf32, #tpu.memory_space<vmem>>, vector<2x256xf32>
    %c0_33 = arith.constant 0 : index
    %c1 = arith.constant 1 : index
    %61 = vector.load %arg1[%c0_33, %c1] : memref<2x49xf32, #tpu.memory_space<vmem>>, vector<2x1xf32>
    %62 = vector.broadcast %61 : vector<2x1xf32> to vector<2x256xf32>
    %63 = arith.mulf %62, %60 : vector<2x256xf32>
    %64 = arith.addf %59, %63 : vector<2x256xf32>
    %c0_34 = arith.constant 0 : index
    %c94 = arith.constant 94 : index
    %65 = vector.load %arg5[%c0_34, %c94] : memref<2x512xf32, #tpu.memory_space<vmem>>, vector<2x256xf32>
    %c0_35 = arith.constant 0 : index
    %c8 = arith.constant 8 : index
    %66 = vector.load %arg1[%c0_35, %c8] : memref<2x49xf32, #tpu.memory_space<vmem>>, vector<2x1xf32>
    %67 = vector.broadcast %66 : vector<2x1xf32> to vector<2x256xf32>
    %68 = arith.mulf %67, %65 : vector<2x256xf32>
    %69 = arith.addf %64, %68 : vector<2x256xf32>
    %c0_36 = arith.constant 0 : index
    %c110 = arith.constant 110 : index
    %70 = vector.load %arg5[%c0_36, %c110] : memref<2x512xf32, #tpu.memory_space<vmem>>, vector<2x256xf32>
    %c0_37 = arith.constant 0 : index
    %c15 = arith.constant 15 : index
    %71 = vector.load %arg1[%c0_37, %c15] : memref<2x49xf32, #tpu.memory_space<vmem>>, vector<2x1xf32>
    %72 = vector.broadcast %71 : vector<2x1xf32> to vector<2x256xf32>
    %73 = arith.mulf %72, %70 : vector<2x256xf32>
    %74 = arith.addf %69, %73 : vector<2x256xf32>
    %c0_38 = arith.constant 0 : index
    %c126 = arith.constant 126 : index
    %75 = vector.load %arg5[%c0_38, %c126] : memref<2x512xf32, #tpu.memory_space<vmem>>, vector<2x256xf32>
    %c0_39 = arith.constant 0 : index
    %c22 = arith.constant 22 : index
    %76 = vector.load %arg1[%c0_39, %c22] : memref<2x49xf32, #tpu.memory_space<vmem>>, vector<2x1xf32>
    %77 = vector.broadcast %76 : vector<2x1xf32> to vector<2x256xf32>
    %78 = arith.mulf %77, %75 : vector<2x256xf32>
    %79 = arith.addf %74, %78 : vector<2x256xf32>
    %c0_40 = arith.constant 0 : index
    %c142 = arith.constant 142 : index
    %80 = vector.load %arg5[%c0_40, %c142] : memref<2x512xf32, #tpu.memory_space<vmem>>, vector<2x256xf32>
    %c0_41 = arith.constant 0 : index
    %c29 = arith.constant 29 : index
    %81 = vector.load %arg1[%c0_41, %c29] : memref<2x49xf32, #tpu.memory_space<vmem>>, vector<2x1xf32>
    %82 = vector.broadcast %81 : vector<2x1xf32> to vector<2x256xf32>
    %83 = arith.mulf %82, %80 : vector<2x256xf32>
    %84 = arith.addf %79, %83 : vector<2x256xf32>
    %c0_42 = arith.constant 0 : index
    %c158 = arith.constant 158 : index
    %85 = vector.load %arg5[%c0_42, %c158] : memref<2x512xf32, #tpu.memory_space<vmem>>, vector<2x256xf32>
    %c0_43 = arith.constant 0 : index
    %c36 = arith.constant 36 : index
    %86 = vector.load %arg1[%c0_43, %c36] : memref<2x49xf32, #tpu.memory_space<vmem>>, vector<2x1xf32>
    %87 = vector.broadcast %86 : vector<2x1xf32> to vector<2x256xf32>
    %88 = arith.mulf %87, %85 : vector<2x256xf32>
    %89 = arith.addf %84, %88 : vector<2x256xf32>
    %c0_44 = arith.constant 0 : index
    %c174 = arith.constant 174 : index
    %90 = vector.load %arg5[%c0_44, %c174] : memref<2x512xf32, #tpu.memory_space<vmem>>, vector<2x256xf32>
    %c0_45 = arith.constant 0 : index
    %c43 = arith.constant 43 : index
    %91 = vector.load %arg1[%c0_45, %c43] : memref<2x49xf32, #tpu.memory_space<vmem>>, vector<2x1xf32>
    %92 = vector.broadcast %91 : vector<2x1xf32> to vector<2x256xf32>
    %93 = arith.mulf %92, %90 : vector<2x256xf32>
    %94 = arith.addf %89, %93 : vector<2x256xf32>
    %c1_46 = arith.constant 1 : index
    %c0_47 = arith.constant 0 : index
    %95 = vector.load %arg2[%c1_46, %c0_47] : memref<7x256xf32, #tpu.memory_space<vmem>>, vector<1x256xf32>
    %96 = vector.broadcast %95 : vector<1x256xf32> to vector<2x256xf32>
    %97 = arith.mulf %94, %96 : vector<2x256xf32>
    %98 = arith.addf %58, %97 : vector<2x256xf32>
    %cst_48 = arith.constant 0.000000e+00 : f32
    %99 = vector.broadcast %cst_48 : f32 to vector<2x256xf32>
    %c0_49 = arith.constant 0 : index
    %c79 = arith.constant 79 : index
    %100 = vector.load %arg5[%c0_49, %c79] : memref<2x512xf32, #tpu.memory_space<vmem>>, vector<2x256xf32>
    %c0_50 = arith.constant 0 : index
    %c2 = arith.constant 2 : index
    %101 = vector.load %arg1[%c0_50, %c2] : memref<2x49xf32, #tpu.memory_space<vmem>>, vector<2x1xf32>
    %102 = vector.broadcast %101 : vector<2x1xf32> to vector<2x256xf32>
    %103 = arith.mulf %102, %100 : vector<2x256xf32>
    %104 = arith.addf %99, %103 : vector<2x256xf32>
    %c0_51 = arith.constant 0 : index
    %c95 = arith.constant 95 : index
    %105 = vector.load %arg5[%c0_51, %c95] : memref<2x512xf32, #tpu.memory_space<vmem>>, vector<2x256xf32>
    %c0_52 = arith.constant 0 : index
    %c9 = arith.constant 9 : index
    %106 = vector.load %arg1[%c0_52, %c9] : memref<2x49xf32, #tpu.memory_space<vmem>>, vector<2x1xf32>
    %107 = vector.broadcast %106 : vector<2x1xf32> to vector<2x256xf32>
    %108 = arith.mulf %107, %105 : vector<2x256xf32>
    %109 = arith.addf %104, %108 : vector<2x256xf32>
    %c0_53 = arith.constant 0 : index
    %c111 = arith.constant 111 : index
    %110 = vector.load %arg5[%c0_53, %c111] : memref<2x512xf32, #tpu.memory_space<vmem>>, vector<2x256xf32>
    %c0_54 = arith.constant 0 : index
    %c16 = arith.constant 16 : index
    %111 = vector.load %arg1[%c0_54, %c16] : memref<2x49xf32, #tpu.memory_space<vmem>>, vector<2x1xf32>
    %112 = vector.broadcast %111 : vector<2x1xf32> to vector<2x256xf32>
    %113 = arith.mulf %112, %110 : vector<2x256xf32>
    %114 = arith.addf %109, %113 : vector<2x256xf32>
    %c0_55 = arith.constant 0 : index
    %c127 = arith.constant 127 : index
    %115 = vector.load %arg5[%c0_55, %c127] : memref<2x512xf32, #tpu.memory_space<vmem>>, vector<2x256xf32>
    %c0_56 = arith.constant 0 : index
    %c23 = arith.constant 23 : index
    %116 = vector.load %arg1[%c0_56, %c23] : memref<2x49xf32, #tpu.memory_space<vmem>>, vector<2x1xf32>
    %117 = vector.broadcast %116 : vector<2x1xf32> to vector<2x256xf32>
    %118 = arith.mulf %117, %115 : vector<2x256xf32>
    %119 = arith.addf %114, %118 : vector<2x256xf32>
    %c0_57 = arith.constant 0 : index
    %c143 = arith.constant 143 : index
    %120 = vector.load %arg5[%c0_57, %c143] : memref<2x512xf32, #tpu.memory_space<vmem>>, vector<2x256xf32>
    %c0_58 = arith.constant 0 : index
    %c30 = arith.constant 30 : index
    %121 = vector.load %arg1[%c0_58, %c30] : memref<2x49xf32, #tpu.memory_space<vmem>>, vector<2x1xf32>
    %122 = vector.broadcast %121 : vector<2x1xf32> to vector<2x256xf32>
    %123 = arith.mulf %122, %120 : vector<2x256xf32>
    %124 = arith.addf %119, %123 : vector<2x256xf32>
    %c0_59 = arith.constant 0 : index
    %c159 = arith.constant 159 : index
    %125 = vector.load %arg5[%c0_59, %c159] : memref<2x512xf32, #tpu.memory_space<vmem>>, vector<2x256xf32>
    %c0_60 = arith.constant 0 : index
    %c37 = arith.constant 37 : index
    %126 = vector.load %arg1[%c0_60, %c37] : memref<2x49xf32, #tpu.memory_space<vmem>>, vector<2x1xf32>
    %127 = vector.broadcast %126 : vector<2x1xf32> to vector<2x256xf32>
    %128 = arith.mulf %127, %125 : vector<2x256xf32>
    %129 = arith.addf %124, %128 : vector<2x256xf32>
    %c0_61 = arith.constant 0 : index
    %c175 = arith.constant 175 : index
    %130 = vector.load %arg5[%c0_61, %c175] : memref<2x512xf32, #tpu.memory_space<vmem>>, vector<2x256xf32>
    %c0_62 = arith.constant 0 : index
    %c44 = arith.constant 44 : index
    %131 = vector.load %arg1[%c0_62, %c44] : memref<2x49xf32, #tpu.memory_space<vmem>>, vector<2x1xf32>
    %132 = vector.broadcast %131 : vector<2x1xf32> to vector<2x256xf32>
    %133 = arith.mulf %132, %130 : vector<2x256xf32>
    %134 = arith.addf %129, %133 : vector<2x256xf32>
    %c2_63 = arith.constant 2 : index
    %c0_64 = arith.constant 0 : index
    %135 = vector.load %arg2[%c2_63, %c0_64] : memref<7x256xf32, #tpu.memory_space<vmem>>, vector<1x256xf32>
    %136 = vector.broadcast %135 : vector<1x256xf32> to vector<2x256xf32>
    %137 = arith.mulf %134, %136 : vector<2x256xf32>
    %138 = arith.addf %98, %137 : vector<2x256xf32>
    %cst_65 = arith.constant 0.000000e+00 : f32
    %139 = vector.broadcast %cst_65 : f32 to vector<2x256xf32>
    %c0_66 = arith.constant 0 : index
    %c80 = arith.constant 80 : index
    %140 = vector.load %arg5[%c0_66, %c80] : memref<2x512xf32, #tpu.memory_space<vmem>>, vector<2x256xf32>
    %c0_67 = arith.constant 0 : index
    %c3 = arith.constant 3 : index
    %141 = vector.load %arg1[%c0_67, %c3] : memref<2x49xf32, #tpu.memory_space<vmem>>, vector<2x1xf32>
    %142 = vector.broadcast %141 : vector<2x1xf32> to vector<2x256xf32>
    %143 = arith.mulf %142, %140 : vector<2x256xf32>
    %144 = arith.addf %139, %143 : vector<2x256xf32>
    %c0_68 = arith.constant 0 : index
    %c96 = arith.constant 96 : index
    %145 = vector.load %arg5[%c0_68, %c96] : memref<2x512xf32, #tpu.memory_space<vmem>>, vector<2x256xf32>
    %c0_69 = arith.constant 0 : index
    %c10 = arith.constant 10 : index
    %146 = vector.load %arg1[%c0_69, %c10] : memref<2x49xf32, #tpu.memory_space<vmem>>, vector<2x1xf32>
    %147 = vector.broadcast %146 : vector<2x1xf32> to vector<2x256xf32>
    %148 = arith.mulf %147, %145 : vector<2x256xf32>
    %149 = arith.addf %144, %148 : vector<2x256xf32>
    %c0_70 = arith.constant 0 : index
    %c112 = arith.constant 112 : index
    %150 = vector.load %arg5[%c0_70, %c112] : memref<2x512xf32, #tpu.memory_space<vmem>>, vector<2x256xf32>
    %c0_71 = arith.constant 0 : index
    %c17 = arith.constant 17 : index
    %151 = vector.load %arg1[%c0_71, %c17] : memref<2x49xf32, #tpu.memory_space<vmem>>, vector<2x1xf32>
    %152 = vector.broadcast %151 : vector<2x1xf32> to vector<2x256xf32>
    %153 = arith.mulf %152, %150 : vector<2x256xf32>
    %154 = arith.addf %149, %153 : vector<2x256xf32>
    %c0_72 = arith.constant 0 : index
    %c128_73 = arith.constant 128 : index
    %155 = vector.load %arg5[%c0_72, %c128_73] : memref<2x512xf32, #tpu.memory_space<vmem>>, vector<2x256xf32>
    %c0_74 = arith.constant 0 : index
    %c24 = arith.constant 24 : index
    %156 = vector.load %arg1[%c0_74, %c24] : memref<2x49xf32, #tpu.memory_space<vmem>>, vector<2x1xf32>
    %157 = vector.broadcast %156 : vector<2x1xf32> to vector<2x256xf32>
    %158 = arith.mulf %157, %155 : vector<2x256xf32>
    %159 = arith.addf %154, %158 : vector<2x256xf32>
    %c0_75 = arith.constant 0 : index
    %c144 = arith.constant 144 : index
    %160 = vector.load %arg5[%c0_75, %c144] : memref<2x512xf32, #tpu.memory_space<vmem>>, vector<2x256xf32>
    %c0_76 = arith.constant 0 : index
    %c31 = arith.constant 31 : index
    %161 = vector.load %arg1[%c0_76, %c31] : memref<2x49xf32, #tpu.memory_space<vmem>>, vector<2x1xf32>
    %162 = vector.broadcast %161 : vector<2x1xf32> to vector<2x256xf32>
    %163 = arith.mulf %162, %160 : vector<2x256xf32>
    %164 = arith.addf %159, %163 : vector<2x256xf32>
    %c0_77 = arith.constant 0 : index
    %c160 = arith.constant 160 : index
    %165 = vector.load %arg5[%c0_77, %c160] : memref<2x512xf32, #tpu.memory_space<vmem>>, vector<2x256xf32>
    %c0_78 = arith.constant 0 : index
    %c38 = arith.constant 38 : index
    %166 = vector.load %arg1[%c0_78, %c38] : memref<2x49xf32, #tpu.memory_space<vmem>>, vector<2x1xf32>
    %167 = vector.broadcast %166 : vector<2x1xf32> to vector<2x256xf32>
    %168 = arith.mulf %167, %165 : vector<2x256xf32>
    %169 = arith.addf %164, %168 : vector<2x256xf32>
    %c0_79 = arith.constant 0 : index
    %c176 = arith.constant 176 : index
    %170 = vector.load %arg5[%c0_79, %c176] : memref<2x512xf32, #tpu.memory_space<vmem>>, vector<2x256xf32>
    %c0_80 = arith.constant 0 : index
    %c45 = arith.constant 45 : index
    %171 = vector.load %arg1[%c0_80, %c45] : memref<2x49xf32, #tpu.memory_space<vmem>>, vector<2x1xf32>
    %172 = vector.broadcast %171 : vector<2x1xf32> to vector<2x256xf32>
    %173 = arith.mulf %172, %170 : vector<2x256xf32>
    %174 = arith.addf %169, %173 : vector<2x256xf32>
    %c3_81 = arith.constant 3 : index
    %c0_82 = arith.constant 0 : index
    %175 = vector.load %arg2[%c3_81, %c0_82] : memref<7x256xf32, #tpu.memory_space<vmem>>, vector<1x256xf32>
    %176 = vector.broadcast %175 : vector<1x256xf32> to vector<2x256xf32>
    %177 = arith.mulf %174, %176 : vector<2x256xf32>
    %178 = arith.addf %138, %177 : vector<2x256xf32>
    %cst_83 = arith.constant 0.000000e+00 : f32
    %179 = vector.broadcast %cst_83 : f32 to vector<2x256xf32>
    %c0_84 = arith.constant 0 : index
    %c81 = arith.constant 81 : index
    %180 = vector.load %arg5[%c0_84, %c81] : memref<2x512xf32, #tpu.memory_space<vmem>>, vector<2x256xf32>
    %c0_85 = arith.constant 0 : index
    %c4 = arith.constant 4 : index
    %181 = vector.load %arg1[%c0_85, %c4] : memref<2x49xf32, #tpu.memory_space<vmem>>, vector<2x1xf32>
    %182 = vector.broadcast %181 : vector<2x1xf32> to vector<2x256xf32>
    %183 = arith.mulf %182, %180 : vector<2x256xf32>
    %184 = arith.addf %179, %183 : vector<2x256xf32>
    %c0_86 = arith.constant 0 : index
    %c97 = arith.constant 97 : index
    %185 = vector.load %arg5[%c0_86, %c97] : memref<2x512xf32, #tpu.memory_space<vmem>>, vector<2x256xf32>
    %c0_87 = arith.constant 0 : index
    %c11 = arith.constant 11 : index
    %186 = vector.load %arg1[%c0_87, %c11] : memref<2x49xf32, #tpu.memory_space<vmem>>, vector<2x1xf32>
    %187 = vector.broadcast %186 : vector<2x1xf32> to vector<2x256xf32>
    %188 = arith.mulf %187, %185 : vector<2x256xf32>
    %189 = arith.addf %184, %188 : vector<2x256xf32>
    %c0_88 = arith.constant 0 : index
    %c113 = arith.constant 113 : index
    %190 = vector.load %arg5[%c0_88, %c113] : memref<2x512xf32, #tpu.memory_space<vmem>>, vector<2x256xf32>
    %c0_89 = arith.constant 0 : index
    %c18 = arith.constant 18 : index
    %191 = vector.load %arg1[%c0_89, %c18] : memref<2x49xf32, #tpu.memory_space<vmem>>, vector<2x1xf32>
    %192 = vector.broadcast %191 : vector<2x1xf32> to vector<2x256xf32>
    %193 = arith.mulf %192, %190 : vector<2x256xf32>
    %194 = arith.addf %189, %193 : vector<2x256xf32>
    %c0_90 = arith.constant 0 : index
    %c129 = arith.constant 129 : index
    %195 = vector.load %arg5[%c0_90, %c129] : memref<2x512xf32, #tpu.memory_space<vmem>>, vector<2x256xf32>
    %c0_91 = arith.constant 0 : index
    %c25 = arith.constant 25 : index
    %196 = vector.load %arg1[%c0_91, %c25] : memref<2x49xf32, #tpu.memory_space<vmem>>, vector<2x1xf32>
    %197 = vector.broadcast %196 : vector<2x1xf32> to vector<2x256xf32>
    %198 = arith.mulf %197, %195 : vector<2x256xf32>
    %199 = arith.addf %194, %198 : vector<2x256xf32>
    %c0_92 = arith.constant 0 : index
    %c145 = arith.constant 145 : index
    %200 = vector.load %arg5[%c0_92, %c145] : memref<2x512xf32, #tpu.memory_space<vmem>>, vector<2x256xf32>
    %c0_93 = arith.constant 0 : index
    %c32 = arith.constant 32 : index
    %201 = vector.load %arg1[%c0_93, %c32] : memref<2x49xf32, #tpu.memory_space<vmem>>, vector<2x1xf32>
    %202 = vector.broadcast %201 : vector<2x1xf32> to vector<2x256xf32>
    %203 = arith.mulf %202, %200 : vector<2x256xf32>
    %204 = arith.addf %199, %203 : vector<2x256xf32>
    %c0_94 = arith.constant 0 : index
    %c161 = arith.constant 161 : index
    %205 = vector.load %arg5[%c0_94, %c161] : memref<2x512xf32, #tpu.memory_space<vmem>>, vector<2x256xf32>
    %c0_95 = arith.constant 0 : index
    %c39 = arith.constant 39 : index
    %206 = vector.load %arg1[%c0_95, %c39] : memref<2x49xf32, #tpu.memory_space<vmem>>, vector<2x1xf32>
    %207 = vector.broadcast %206 : vector<2x1xf32> to vector<2x256xf32>
    %208 = arith.mulf %207, %205 : vector<2x256xf32>
    %209 = arith.addf %204, %208 : vector<2x256xf32>
    %c0_96 = arith.constant 0 : index
    %c177 = arith.constant 177 : index
    %210 = vector.load %arg5[%c0_96, %c177] : memref<2x512xf32, #tpu.memory_space<vmem>>, vector<2x256xf32>
    %c0_97 = arith.constant 0 : index
    %c46 = arith.constant 46 : index
    %211 = vector.load %arg1[%c0_97, %c46] : memref<2x49xf32, #tpu.memory_space<vmem>>, vector<2x1xf32>
    %212 = vector.broadcast %211 : vector<2x1xf32> to vector<2x256xf32>
    %213 = arith.mulf %212, %210 : vector<2x256xf32>
    %214 = arith.addf %209, %213 : vector<2x256xf32>
    %c4_98 = arith.constant 4 : index
    %c0_99 = arith.constant 0 : index
    %215 = vector.load %arg2[%c4_98, %c0_99] : memref<7x256xf32, #tpu.memory_space<vmem>>, vector<1x256xf32>
    %216 = vector.broadcast %215 : vector<1x256xf32> to vector<2x256xf32>
    %217 = arith.mulf %214, %216 : vector<2x256xf32>
    %218 = arith.addf %178, %217 : vector<2x256xf32>
    %cst_100 = arith.constant 0.000000e+00 : f32
    %219 = vector.broadcast %cst_100 : f32 to vector<2x256xf32>
    %c0_101 = arith.constant 0 : index
    %c82 = arith.constant 82 : index
    %220 = vector.load %arg5[%c0_101, %c82] : memref<2x512xf32, #tpu.memory_space<vmem>>, vector<2x256xf32>
    %c0_102 = arith.constant 0 : index
    %c5 = arith.constant 5 : index
    %221 = vector.load %arg1[%c0_102, %c5] : memref<2x49xf32, #tpu.memory_space<vmem>>, vector<2x1xf32>
    %222 = vector.broadcast %221 : vector<2x1xf32> to vector<2x256xf32>
    %223 = arith.mulf %222, %220 : vector<2x256xf32>
    %224 = arith.addf %219, %223 : vector<2x256xf32>
    %c0_103 = arith.constant 0 : index
    %c98 = arith.constant 98 : index
    %225 = vector.load %arg5[%c0_103, %c98] : memref<2x512xf32, #tpu.memory_space<vmem>>, vector<2x256xf32>
    %c0_104 = arith.constant 0 : index
    %c12 = arith.constant 12 : index
    %226 = vector.load %arg1[%c0_104, %c12] : memref<2x49xf32, #tpu.memory_space<vmem>>, vector<2x1xf32>
    %227 = vector.broadcast %226 : vector<2x1xf32> to vector<2x256xf32>
    %228 = arith.mulf %227, %225 : vector<2x256xf32>
    %229 = arith.addf %224, %228 : vector<2x256xf32>
    %c0_105 = arith.constant 0 : index
    %c114 = arith.constant 114 : index
    %230 = vector.load %arg5[%c0_105, %c114] : memref<2x512xf32, #tpu.memory_space<vmem>>, vector<2x256xf32>
    %c0_106 = arith.constant 0 : index
    %c19 = arith.constant 19 : index
    %231 = vector.load %arg1[%c0_106, %c19] : memref<2x49xf32, #tpu.memory_space<vmem>>, vector<2x1xf32>
    %232 = vector.broadcast %231 : vector<2x1xf32> to vector<2x256xf32>
    %233 = arith.mulf %232, %230 : vector<2x256xf32>
    %234 = arith.addf %229, %233 : vector<2x256xf32>
    %c0_107 = arith.constant 0 : index
    %c130 = arith.constant 130 : index
    %235 = vector.load %arg5[%c0_107, %c130] : memref<2x512xf32, #tpu.memory_space<vmem>>, vector<2x256xf32>
    %c0_108 = arith.constant 0 : index
    %c26 = arith.constant 26 : index
    %236 = vector.load %arg1[%c0_108, %c26] : memref<2x49xf32, #tpu.memory_space<vmem>>, vector<2x1xf32>
    %237 = vector.broadcast %236 : vector<2x1xf32> to vector<2x256xf32>
    %238 = arith.mulf %237, %235 : vector<2x256xf32>
    %239 = arith.addf %234, %238 : vector<2x256xf32>
    %c0_109 = arith.constant 0 : index
    %c146 = arith.constant 146 : index
    %240 = vector.load %arg5[%c0_109, %c146] : memref<2x512xf32, #tpu.memory_space<vmem>>, vector<2x256xf32>
    %c0_110 = arith.constant 0 : index
    %c33 = arith.constant 33 : index
    %241 = vector.load %arg1[%c0_110, %c33] : memref<2x49xf32, #tpu.memory_space<vmem>>, vector<2x1xf32>
    %242 = vector.broadcast %241 : vector<2x1xf32> to vector<2x256xf32>
    %243 = arith.mulf %242, %240 : vector<2x256xf32>
    %244 = arith.addf %239, %243 : vector<2x256xf32>
    %c0_111 = arith.constant 0 : index
    %c162 = arith.constant 162 : index
    %245 = vector.load %arg5[%c0_111, %c162] : memref<2x512xf32, #tpu.memory_space<vmem>>, vector<2x256xf32>
    %c0_112 = arith.constant 0 : index
    %c40 = arith.constant 40 : index
    %246 = vector.load %arg1[%c0_112, %c40] : memref<2x49xf32, #tpu.memory_space<vmem>>, vector<2x1xf32>
    %247 = vector.broadcast %246 : vector<2x1xf32> to vector<2x256xf32>
    %248 = arith.mulf %247, %245 : vector<2x256xf32>
    %249 = arith.addf %244, %248 : vector<2x256xf32>
    %c0_113 = arith.constant 0 : index
    %c178 = arith.constant 178 : index
    %250 = vector.load %arg5[%c0_113, %c178] : memref<2x512xf32, #tpu.memory_space<vmem>>, vector<2x256xf32>
    %c0_114 = arith.constant 0 : index
    %c47 = arith.constant 47 : index
    %251 = vector.load %arg1[%c0_114, %c47] : memref<2x49xf32, #tpu.memory_space<vmem>>, vector<2x1xf32>
    %252 = vector.broadcast %251 : vector<2x1xf32> to vector<2x256xf32>
    %253 = arith.mulf %252, %250 : vector<2x256xf32>
    %254 = arith.addf %249, %253 : vector<2x256xf32>
    %c5_115 = arith.constant 5 : index
    %c0_116 = arith.constant 0 : index
    %255 = vector.load %arg2[%c5_115, %c0_116] : memref<7x256xf32, #tpu.memory_space<vmem>>, vector<1x256xf32>
    %256 = vector.broadcast %255 : vector<1x256xf32> to vector<2x256xf32>
    %257 = arith.mulf %254, %256 : vector<2x256xf32>
    %258 = arith.addf %218, %257 : vector<2x256xf32>
    %cst_117 = arith.constant 0.000000e+00 : f32
    %259 = vector.broadcast %cst_117 : f32 to vector<2x256xf32>
    %c0_118 = arith.constant 0 : index
    %c83 = arith.constant 83 : index
    %260 = vector.load %arg5[%c0_118, %c83] : memref<2x512xf32, #tpu.memory_space<vmem>>, vector<2x256xf32>
    %c0_119 = arith.constant 0 : index
    %c6 = arith.constant 6 : index
    %261 = vector.load %arg1[%c0_119, %c6] : memref<2x49xf32, #tpu.memory_space<vmem>>, vector<2x1xf32>
    %262 = vector.broadcast %261 : vector<2x1xf32> to vector<2x256xf32>
    %263 = arith.mulf %262, %260 : vector<2x256xf32>
    %264 = arith.addf %259, %263 : vector<2x256xf32>
    %c0_120 = arith.constant 0 : index
    %c99 = arith.constant 99 : index
    %265 = vector.load %arg5[%c0_120, %c99] : memref<2x512xf32, #tpu.memory_space<vmem>>, vector<2x256xf32>
    %c0_121 = arith.constant 0 : index
    %c13 = arith.constant 13 : index
    %266 = vector.load %arg1[%c0_121, %c13] : memref<2x49xf32, #tpu.memory_space<vmem>>, vector<2x1xf32>
    %267 = vector.broadcast %266 : vector<2x1xf32> to vector<2x256xf32>
    %268 = arith.mulf %267, %265 : vector<2x256xf32>
    %269 = arith.addf %264, %268 : vector<2x256xf32>
    %c0_122 = arith.constant 0 : index
    %c115 = arith.constant 115 : index
    %270 = vector.load %arg5[%c0_122, %c115] : memref<2x512xf32, #tpu.memory_space<vmem>>, vector<2x256xf32>
    %c0_123 = arith.constant 0 : index
    %c20 = arith.constant 20 : index
    %271 = vector.load %arg1[%c0_123, %c20] : memref<2x49xf32, #tpu.memory_space<vmem>>, vector<2x1xf32>
    %272 = vector.broadcast %271 : vector<2x1xf32> to vector<2x256xf32>
    %273 = arith.mulf %272, %270 : vector<2x256xf32>
    %274 = arith.addf %269, %273 : vector<2x256xf32>
    %c0_124 = arith.constant 0 : index
    %c131 = arith.constant 131 : index
    %275 = vector.load %arg5[%c0_124, %c131] : memref<2x512xf32, #tpu.memory_space<vmem>>, vector<2x256xf32>
    %c0_125 = arith.constant 0 : index
    %c27 = arith.constant 27 : index
    %276 = vector.load %arg1[%c0_125, %c27] : memref<2x49xf32, #tpu.memory_space<vmem>>, vector<2x1xf32>
    %277 = vector.broadcast %276 : vector<2x1xf32> to vector<2x256xf32>
    %278 = arith.mulf %277, %275 : vector<2x256xf32>
    %279 = arith.addf %274, %278 : vector<2x256xf32>
    %c0_126 = arith.constant 0 : index
    %c147 = arith.constant 147 : index
    %280 = vector.load %arg5[%c0_126, %c147] : memref<2x512xf32, #tpu.memory_space<vmem>>, vector<2x256xf32>
    %c0_127 = arith.constant 0 : index
    %c34 = arith.constant 34 : index
    %281 = vector.load %arg1[%c0_127, %c34] : memref<2x49xf32, #tpu.memory_space<vmem>>, vector<2x1xf32>
    %282 = vector.broadcast %281 : vector<2x1xf32> to vector<2x256xf32>
    %283 = arith.mulf %282, %280 : vector<2x256xf32>
    %284 = arith.addf %279, %283 : vector<2x256xf32>
    %c0_128 = arith.constant 0 : index
    %c163 = arith.constant 163 : index
    %285 = vector.load %arg5[%c0_128, %c163] : memref<2x512xf32, #tpu.memory_space<vmem>>, vector<2x256xf32>
    %c0_129 = arith.constant 0 : index
    %c41 = arith.constant 41 : index
    %286 = vector.load %arg1[%c0_129, %c41] : memref<2x49xf32, #tpu.memory_space<vmem>>, vector<2x1xf32>
    %287 = vector.broadcast %286 : vector<2x1xf32> to vector<2x256xf32>
    %288 = arith.mulf %287, %285 : vector<2x256xf32>
    %289 = arith.addf %284, %288 : vector<2x256xf32>
    %c0_130 = arith.constant 0 : index
    %c179 = arith.constant 179 : index
    %290 = vector.load %arg5[%c0_130, %c179] : memref<2x512xf32, #tpu.memory_space<vmem>>, vector<2x256xf32>
    %c0_131 = arith.constant 0 : index
    %c48 = arith.constant 48 : index
    %291 = vector.load %arg1[%c0_131, %c48] : memref<2x49xf32, #tpu.memory_space<vmem>>, vector<2x1xf32>
    %292 = vector.broadcast %291 : vector<2x1xf32> to vector<2x256xf32>
    %293 = arith.mulf %292, %290 : vector<2x256xf32>
    %294 = arith.addf %289, %293 : vector<2x256xf32>
    %c6_132 = arith.constant 6 : index
    %c0_133 = arith.constant 0 : index
    %295 = vector.load %arg2[%c6_132, %c0_133] : memref<7x256xf32, #tpu.memory_space<vmem>>, vector<1x256xf32>
    %296 = vector.broadcast %295 : vector<1x256xf32> to vector<2x256xf32>
    %297 = arith.mulf %294, %296 : vector<2x256xf32>
    %298 = arith.addf %258, %297 : vector<2x256xf32>
    %cst_134 = arith.constant dense<0.000000e+00> : vector<256xf32>
    %299 = vector.multi_reduction <add>, %298, %cst_134 [0] : vector<2x256xf32> to vector<256xf32>
    %300 = vector.shape_cast %299 : vector<256xf32> to vector<1x256xf32>
    %301 = arith.negf %300 : vector<1x256xf32>
    %302 = math.exp %301 : vector<1x256xf32>
    %cst_135 = arith.constant 1.000000e+00 : f32
    %303 = vector.broadcast %cst_135 : f32 to vector<1x256xf32>
    %304 = arith.addf %303, %302 : vector<1x256xf32>
    %305 = arith.divf %303, %304 : vector<1x256xf32>
    %c0_136 = arith.constant 0 : index
    %c0_137 = arith.constant 0 : index
    %c0_138 = arith.constant 0 : index
    %306 = vector.load %arg3[%c0_136, %c0_137, %c0_138] : memref<1x4x256xf32, #tpu.memory_space<vmem>>, vector<1x4x256xf32>
    %307 = vector.shape_cast %306 : vector<1x4x256xf32> to vector<4x256xf32>
    %308 = vector.broadcast %305 : vector<1x256xf32> to vector<4x256xf32>
    %309 = arith.mulf %307, %308 : vector<4x256xf32>
    %c0_139 = arith.constant 0 : index
    %c0_140 = arith.constant 0 : index
    %c0_141 = arith.constant 0 : index
    %310 = vector.load %arg4[%c0_139, %c0_140, %c0_141] : memref<1x4x256xf32, #tpu.memory_space<vmem>>, vector<1x4x256xf32>
    %311 = vector.shape_cast %310 : vector<1x4x256xf32> to vector<4x256xf32>
    %312 = vector.shape_cast %309 : vector<4x256xf32> to vector<1x4x256xf32>
    tpu.vector_store %arg4[%c0_139, %c0_140, %c0_141], %312 {strides = array<i32>} : memref<1x4x256xf32, #tpu.memory_space<vmem>>, vector<1x4x256xf32>,
    return
  }
  func.func @transform_0(%arg0: i32) -> (i32, i32) {
    %c0_i32 = arith.constant 0 : i32
    %c0_i32_0 = arith.constant 0 : i32
    %c0_i32_1 = arith.constant 0 : i32
    return %c0_i32, %c0_i32_0 : i32, i32
  }
  func.func @transform_1(%arg0: i32) -> (i32, i32) {
    %c0_i32 = arith.constant 0 : i32
    %c0_i32_0 = arith.constant 0 : i32
    %c0_i32_1 = arith.constant 0 : i32
    return %c0_i32, %c0_i32_0 : i32, i32
  }
  func.func @transform_2(%arg0: i32) -> (i32, i32, i32) {
    %c0_i32 = arith.constant 0 : i32
    %c0_i32_0 = arith.constant 0 : i32
    %c0_i32_1 = arith.constant 0 : i32
    return %arg0, %c0_i32, %c0_i32_0 : i32, i32, i32
  }
  func.func @transform_3(%arg0: i32) -> (i32, i32, i32) {
    %c0_i32 = arith.constant 0 : i32
    %c0_i32_0 = arith.constant 0 : i32
    %c0_i32_1 = arith.constant 0 : i32
    return %arg0, %c0_i32, %c0_i32_0 : i32, i32, i32
  }
}

</mosaic_0001>

<llo_original>
// kernel: tpu_custom_call.1
$region0: #{tpu_custom_call.1}
  #allocation0 [shape = 'u32[]', space=smem, size = 0x4, offset = 0x4, fixed_abs, tag = 'smem constant byte address 0x4 - core index']
  #allocation1 [shape = 'u32[144,128]{1,0:T(1,128)}', space=vmem, size = 0x12000, scoped, tag = 'internal scratch']
  #allocation2 [shape = 'f32[2,512]{1,0:T(2,128)}', space=vmem, size = 0x1000, scoped, tag = 'scratch operand']
  %s0 = inlined_call_operand.hbm [shape: f32[2,49], index: 0, kind: input, shape index: {}]
  %s1 = inlined_call_operand.hbm [shape: f32[7,256], index: 1, kind: input, shape index: {}]
  %s2 = inlined_call_operand.hbm [shape: f32[2,4,256], index: 2, kind: input, shape index: {}]
  %s3 = inlined_call_operand.hbm [shape: f32[2,4,256], index: 3, kind: output, shape index: {}]
  %s4 = sld [smem:[#allocation0]]
  $region57: #{tpu_custom_call.1} parent=0
    _
  %s6 = ssub.s32 1, %s4
  %s7 = scalar_select 0, %s6, %s4
  $region1: #{tpu_custom_call.1} parent=0
    #allocation3 [shape = 'u8[1024]{0}', space=vmem, size = 0x400, scoped, tag = 'input window, operand 0, single buffered']
    #allocation4 [shape = 's32[2]{0}', space=sflag, size = 0x8, scoped, tag = 'scoped memory for tpu_custom_call.1']
    #allocation5 [shape = 's32[2]{0}', space=sflag, size = 0x8, scoped, tag = 'scoped memory for tpu_custom_call.1']
    #allocation6 [shape = 'u8[8192]{0}', space=vmem, size = 0x2000, scoped, tag = 'input window, operand 1, single buffered']
    #allocation7 [shape = 's32[1]{0}', space=sflag, size = 0x4, scoped, tag = 'scoped memory for tpu_custom_call.1']
    #allocation8 [shape = 'u8[8192]{0}', space=vmem, size = 0x2000, scoped, tag = 'input window, operand 2']
    #allocation9 [shape = 'u8[8192]{0}', space=vmem, size = 0x2000, scoped, tag = 'output window, operand 0']
    %8 = vsyncpa [#allocation4], 0
    %9 = vsyncpa [#allocation7], 0
    %10 = vsyncpa [#allocation5], 0
    %s11 = scalar_lea.sflag [#allocation5], 1
    %12 = vsyncpa %s11, 0
    loop: start=0, step=1, limit=4
    $region2: #{tpu_custom_call.1} parent=1 // loop_pre_header
      _
    $region3: #{tpu_custom_call.1} parent=1 // loop_header
      %s14 = sphi 0, %s18
      %p15 = scmp.ge.s32.totalorder %s14, 4
      %s22 = sphi 0, %s22
      %s24 = sphi 0, %s22
      %s25 = sphi 0, %s24
      %s39 = sphi 0, %s25
      %s43 = sphi 0, %s43
      %s45 = sphi 0, %s43
      %s46 = sphi 0, %s45
      %s60 = sphi 0, %s46
      %s66 = sphi 0, %s68
      %s69 = sphi 0, %s66
      %s70 = sphi 0, %s69
      %s86 = sphi 0, %s70
      %s92 = sphi 0, %s94
      %s95 = sphi 0, %s92
      %s96 = sphi 0, %s95
      %s112 = sphi 0, %s96
    $region4: #{tpu_custom_call.1} parent=1 // loop_header_branch
      %17 = sbr.rel (%p15) target = $region8
    $region5: #{tpu_custom_call.1} parent=1 // loop_body
      %s19 = ssub.s32 %s14, 1
      %s20 = ssub.s32 %s14, 2
      %s21 = sadd.s32 %s14, 1
      %s23 = sadd.s32 %s22, 1
      %p26 = scmp.eq.s32.totalorder %s14, 1
      %p27 = scmp.ne.s32.totalorder %s22, %s24
      %p28 = scmp.eq.s32.totalorder %s14, 0
      %p29 = por %p27, %p28
      %p30 = scmp.ne.s32.totalorder %s22, %s24
      %p31 = scmp.eq.s32.totalorder %s19, 1
      %p32 = por %p30, %p31
      %p33 = scmp.ne.s32.totalorder %s24, %s25
      %p34 = scmp.eq.s32.totalorder %s19, 0
      %p35 = por %p33, %p34
      %p36 = scmp.ne.s32.totalorder %s24, %s25
      %p37 = scmp.eq.s32.totalorder %s20, 1
      %p38 = por %p36, %p37
      %p40 = scmp.ne.s32.totalorder %s25, %s39
      %p41 = scmp.eq.s32.totalorder %s20, 0
      %p42 = por %p40, %p41
      %s44 = sadd.s32 %s43, 1
      %p47 = scmp.eq.s32.totalorder %s14, 1
      %p48 = scmp.ne.s32.totalorder %s43, %s45
      %p49 = scmp.eq.s32.totalorder %s14, 0
      %p50 = por %p48, %p49
      %p51 = scmp.ne.s32.totalorder %s43, %s45
      %p52 = scmp.eq.s32.totalorder %s19, 1
      %p53 = por %p51, %p52
      %p54 = scmp.ne.s32.totalorder %s45, %s46
      %p55 = scmp.eq.s32.totalorder %s19, 0
      %p56 = por %p54, %p55
      %p57 = scmp.ne.s32.totalorder %s45, %s46
      %p58 = scmp.eq.s32.totalorder %s20, 1
      %p59 = por %p57, %p58
      %p61 = scmp.ne.s32.totalorder %s46, %s60
      %p62 = scmp.eq.s32.totalorder %s20, 0
      %p63 = por %p61, %p62
      %s64 = ssub.s32 %s14, %s21
      %p65 = scmp.eq.s32.totalorder %s64, 0
      %s67 = sadd.s32 %s66, 1
      %s68 = scalar_select %p65, %s66, %s67
      %p71 = pneg %p65
      %p72 = scmp.eq.s32.totalorder %s14, 1
      %p73 = por %p71, %p72
      %p74 = scmp.ne.s32.totalorder %s66, %s69
      %p75 = scmp.eq.s32.totalorder %s14, 0
      %p76 = por %p74, %p75
      %p77 = scmp.ne.s32.totalorder %s66, %s69
      %p78 = scmp.eq.s32.totalorder %s19, 1
      %p79 = por %p77, %p78
      %p80 = scmp.ne.s32.totalorder %s69, %s70
      %p81 = scmp.eq.s32.totalorder %s19, 0
      %p82 = por %p80, %p81
      %p83 = scmp.ne.s32.totalorder %s69, %s70
      %p84 = scmp.eq.s32.totalorder %s20, 1
      %p85 = por %p83, %p84
      %p87 = scmp.ne.s32.totalorder %s70, %s86
      %p88 = scmp.eq.s32.totalorder %s20, 0
      %p89 = por %p87, %p88
      %s90 = ssub.s32 %s14, %s21
      %p91 = scmp.eq.s32.totalorder %s90, 0
      %s93 = sadd.s32 %s92, 1
      %s94 = scalar_select %p91, %s92, %s93
      %p97 = pneg %p91
      %p98 = scmp.eq.s32.totalorder %s14, 1
      %p99 = por %p97, %p98
      %p100 = scmp.ne.s32.totalorder %s92, %s95
      %p101 = scmp.eq.s32.totalorder %s14, 0
      %p102 = por %p100, %p101
      %p103 = scmp.ne.s32.totalorder %s92, %s95
      %p104 = scmp.eq.s32.totalorder %s19, 1
      %p105 = por %p103, %p104
      %p106 = scmp.ne.s32.totalorder %s95, %s96
      %p107 = scmp.eq.s32.totalorder %s19, 0
      %p108 = por %p106, %p107
      %p109 = scmp.ne.s32.totalorder %s95, %s96
      %p110 = scmp.eq.s32.totalorder %s20, 1
      %p111 = por %p109, %p110
      %p113 = scmp.ne.s32.totalorder %s96, %s112
      %p114 = scmp.eq.s32.totalorder %s20, 0
      %p115 = por %p113, %p114
      %p116 = scmp.le.s32.totalorder 1, %s14
      %p117 = scmp.lt.s32.totalorder %s14, 3
      %p118 = pnand %p116, %p117
      %p119 = pneg %p118
      // Predicated region
      $region9: #{tpu_custom_call.1} parent=5 // pred_check
        _
      $region10: #{tpu_custom_call.1} parent=5 // pred_check_branch
        %121 = sbr.rel (%p118) target = $region12
      $region11: #{tpu_custom_call.1} parent=5 // pred_region
        %s122 = ssub.s32 %s14, 1
        // Predicated region
        $region13: #{tpu_custom_call.1} parent=11 // pred_check
          %p123 = pneg %p35
        $region14: #{tpu_custom_call.1} parent=11 // pred_check_branch
          %125 = sbr.rel (%p123) target = $region16
        $region15: #{tpu_custom_call.1} parent=11 // pred_region
          %s127 = ssub.s32 32, 32
          %128 = vsyncadd [#allocation4], %s127
          %s130 = sshll.u32 [#allocation3], 4
          %s131 = int_to_ptr.vmem [resolvable:$true] %s130
          %133 = dma.hbm_to_vmem [thread:$0]  %s0, 32, %s131, [#allocation4]
        $region16: #{tpu_custom_call.1} parent=11 // pred_fallthru
          _
        // Predicated region
        $region17: #{tpu_custom_call.1} parent=11 // pred_check
          %p134 = pneg %p56
        $region18: #{tpu_custom_call.1} parent=11 // pred_check_branch
          %136 = sbr.rel (%p134) target = $region20
        $region19: #{tpu_custom_call.1} parent=11 // pred_region
          %s138 = ssub.s32 256, 256
          %139 = vsyncadd [#allocation7], %s138
          %s141 = sshll.u32 [#allocation6], 4
          %s142 = int_to_ptr.vmem [resolvable:$true] %s141
          %144 = dma.hbm_to_vmem [thread:$0]  %s1, 256, %s142, [#allocation7]
        $region20: #{tpu_custom_call.1} parent=11 // pred_fallthru
          _
      $region12: #{tpu_custom_call.1} parent=5 // pred_fallthru
        _
      %p145 = scmp.lt.s32.totalorder %s14, 2
      // Predicated region
      $region21: #{tpu_custom_call.1} parent=5 // pred_check
        %p146 = pneg %p145
      $region22: #{tpu_custom_call.1} parent=5 // pred_check_branch
        %148 = sbr.rel (%p146) target = $region24
      $region23: #{tpu_custom_call.1} parent=5 // pred_region
        // Predicated region
        $region25: #{tpu_custom_call.1} parent=23 // pred_check
          %p149 = pneg %p76
        $region26: #{tpu_custom_call.1} parent=23 // pred_check_branch
          %151 = sbr.rel (%p149) target = $region28
        $region27: #{tpu_custom_call.1} parent=23 // pred_region
          %s152 = sand.u32 %s14, 1
          %s153 = scalar_lea.sflag [#allocation4], %s152
          %s154 = sand.u32 %s66, 1
          %s155 = smul.addr %s154, 8
          %s156 = scalar_lea.vmem [#allocation8], %s155
          %s158 = ssub.s32 128, 128
          %159 = vsyncadd %s153, %s158
          %s160 = smul.addr %s14, 2
          %s161 = smul.addr %s160, 64
          %s162 = scalar_lea.hbm %s2, %s161
          %s164 = sshll.u32 %s156, 4
          %s165 = int_to_ptr.vmem [resolvable:$true] %s164
          %167 = dma.hbm_to_vmem [thread:$0]  %s162, 128, %s165, %s153
        $region28: #{tpu_custom_call.1} parent=23 // pred_fallthru
          _
      $region24: #{tpu_custom_call.1} parent=5 // pred_fallthru
        _
      %p168 = scmp.le.s32.totalorder 1, %s14
      %p169 = scmp.lt.s32.totalorder %s14, 3
      %p170 = pnand %p168, %p169
      %p171 = pneg %p170
      // Predicated region
      $region29: #{tpu_custom_call.1} parent=5 // pred_check
        _
      $region30: #{tpu_custom_call.1} parent=5 // pred_check_branch
        %173 = sbr.rel (%p170) target = $region32
      $region31: #{tpu_custom_call.1} parent=5 // pred_region
        %s174 = ssub.s32 %s14, 1
        // Predicated region
        $region33: #{tpu_custom_call.1} parent=31 // pred_check
          %p175 = pneg %p35
        $region34: #{tpu_custom_call.1} parent=31 // pred_check_branch
          %177 = sbr.rel (%p175) target = $region36
        $region35: #{tpu_custom_call.1} parent=31 // pred_region
          %178 = dma.done [#allocation4], 32
        $region36: #{tpu_custom_call.1} parent=31 // pred_fallthru
          _
        // Predicated region
        $region37: #{tpu_custom_call.1} parent=31 // pred_check
          %p179 = pneg %p56
        $region38: #{tpu_custom_call.1} parent=31 // pred_check_branch
          %181 = sbr.rel (%p179) target = $region40
        $region39: #{tpu_custom_call.1} parent=31 // pred_region
          %182 = dma.done [#allocation7], 256
        $region40: #{tpu_custom_call.1} parent=31 // pred_fallthru
          _
        %s183 = sand.u32 %s19, 1
        %s184 = scalar_lea.sflag [#allocation4], %s183
        %s185 = sand.u32 %s69, 1
        %s186 = smul.addr %s185, 8
        %s187 = scalar_lea.vmem [#allocation8], %s186
        // Predicated region
        $region41: #{tpu_custom_call.1} parent=31 // pred_check
          %p188 = pneg %p82
        $region42: #{tpu_custom_call.1} parent=31 // pred_check_branch
          %190 = sbr.rel (%p188) target = $region44
        $region43: #{tpu_custom_call.1} parent=31 // pred_region
          %191 = dma.done %s184, 128
        $region44: #{tpu_custom_call.1} parent=31 // pred_fallthru
          _
        %p192 = pneg %p35
        %p193 = pneg %p32
        %p194 = pneg %p56
        %p195 = pneg %p53
        %s196 = sand.u32 %s19, 1
        %s197 = scalar_lea.sflag [#allocation4], %s196
        %s198 = sand.u32 %s69, 1
        %s199 = smul.addr %s198, 8
        %s200 = scalar_lea.vmem [#allocation8], %s199
        %p201 = pneg %p82
        %p202 = pneg %p79
        %p203 = pneg %p108
        %p204 = pneg %p105
        %s205 = sand.u32 %s95, 1
        %s206 = scalar_lea.sflag [#allocation5], %s205
        %s207 = sand.u32 %s95, 1
        %s208 = smul.addr %s207, 8
        %s209 = scalar_lea.vmem [#allocation9], %s208
        %v210 = vld [vmem:[%s187] sm:$0xff]
        %v212 = vcombine.high %v210, %v210
        %vm214 = vcmask 1043456
        %v215 = vsel %vm214, %v210, 0.0
        %v216 = vrot.slane %v215, 4
        %v217 = vadd.f32 %v215, %v216
        %v218 = vrot.slane %v217, 2
        %v219 = vadd.f32 %v217, %v218
        %v220 = vrot.slane %v219, 1
        %v221 = vadd.f32 %v219, %v220
        %v222 = vsel %vm214, %v212, 0.0
        %v223 = vrot.slane %v222, 4
        %v224 = vadd.f32 %v222, %v223
        %v225 = vrot.slane %v224, 2
        %v226 = vadd.f32 %v224, %v225
        %v227 = vrot.slane %v226, 1
        %v228 = vadd.f32 %v226, %v227
        %v229 = vsel %vm214, %v210, -inf
        %v230 = vrot.slane %v229, 4
        %v231 = vmax.f32 %v229, %v230
        %v232 = vrot.slane %v231, 2
        %v233 = vmax.f32 %v231, %v232
        %v234 = vrot.slane %v233, 1
        %v235 = vmax.f32 %v233, %v234
        %v236 = vsel %vm214, %v212, -inf
        %v237 = vrot.slane %v236, 4
        %v238 = vmax.f32 %v236, %v237
        %v239 = vrot.slane %v238, 2
        %v240 = vmax.f32 %v238, %v239
        %v241 = vrot.slane %v240, 1
        %v242 = vmax.f32 %v240, %v241
        %v243 = vadd.f32 %v221, 0.0
        %v244 = vadd.f32 %v228, 0.0
        %v245 = vmul.f32 %v243, 0.25
        %v246 = vmul.f32 %v244, 0.25
        %247 = vst [vmem:[#allocation2] sm:$0x3] 0.0
        %248 = vst [vmem:[#allocation2 + $0x6] sm:$0x3] 0.0
        %vm249 = vcmask 1040384
        %v250 = vsel %vm249, %v245, %v235
        %v251 = vsel %vm249, %v246, %v242
        %v254 = vcombine.low %v250, %v251
        %v256 = vunpack.c.l.s4 1983009808
        %v257 = vunpack.c.0.s8 %v256
        %v258 = vlaneseq
        %v259 = vshrl.u32 %v258, 7
        %v260 = vsub.s32 %v257, %v259
        %v261 = vrot.slane %v254, %v260
        %263 = vst [vmem:[#allocation2 + $0x2] sm:$0xf] %v261
        %v264 = vld [vmem:[#allocation2] sm:$0x3f]
        %v265 = vld [vmem:[#allocation3] sm:$0x3]
        %267 = vset.pattern.permute.xlu0 0
        %268 = vperm.xlu0 %267, %v265
        %v269 = vpop.permute.xlu0 %268
        %v272 = vcombine.high %v264, %v264
        %v274 = vunpack.c.l.s4 1983009808
        %v275 = vunpack.c.0.s8 %v274
        %v276 = vlaneseq
        %v277 = vshrl.u32 %v276, 7
        %v278 = vsub.s32 %v275, %v277
        %v279 = vrot.slane %v264, %v278
        %v281 = vunpack.c.l.s4 1983009808
        %v282 = vunpack.c.0.s8 %v281
        %v283 = vlaneseq
        %v284 = vshrl.u32 %v283, 7
        %v285 = vsub.s32 %v282, %v284
        %v286 = vrot.slane %v272, %v285
        %v287 = vcombine.high %v279, %v279
        %288 = vrot.lane.b32.xlu0 %v279, 51
        %v289 = vpop.permute.xlu0 %288
        %290 = vrot.lane.b32.xlu0 %v287, 51
        %v291 = vpop.permute.xlu0 %290
        %292 = vrot.lane.b32.xlu0 %v286, 51
        %v293 = vpop.permute.xlu0 %292
        %vm294 = vcmask 416768
        %v295 = vsel %vm294, %v289, %v291
        %v296 = vsel %vm294, %v291, %v293
        %v299 = vmul.f32 %v269, %v295
        %v300 = vmul.f32 %v269, %v296
        %v301 = vadd.f32 %v299, 0.0
        %v302 = vadd.f32 %v300, 0.0
        %v303 = vld [vmem:[#allocation2] sm:$0x3f]
        %v304 = vld [vmem:[#allocation3] sm:$0x3]
        %306 = vset.pattern.permute.xlu0 7
        %307 = vperm.xlu0 %306, %v304
        %v308 = vpop.permute.xlu0 %307
        %v311 = vcombine.high %v303, %v303
        %v313 = vunpack.c.l.s4 1983009808
        %v314 = vunpack.c.0.s8 %v313
        %v315 = vlaneseq
        %v316 = vshrl.u32 %v315, 7
        %v317 = vsub.s32 %v314, %v316
        %v318 = vrot.slane %v303, %v317
        %v320 = vunpack.c.l.s4 1983009808
        %v321 = vunpack.c.0.s8 %v320
        %v322 = vlaneseq
        %v323 = vshrl.u32 %v322, 7
        %v324 = vsub.s32 %v321, %v323
        %v325 = vrot.slane %v311, %v324
        %v326 = vcombine.high %v318, %v318
        %327 = vrot.lane.b32.xlu0 %v318, 35
        %v328 = vpop.permute.xlu0 %327
        %329 = vrot.lane.b32.xlu0 %v326, 35
        %v330 = vpop.permute.xlu0 %329
        %331 = vrot.lane.b32.xlu0 %v325, 35
        %v332 = vpop.permute.xlu0 %331
        %vm333 = vcmask 285696
        %v334 = vsel %vm333, %v328, %v330
        %v335 = vsel %vm333, %v330, %v332
        %v338 = vmul.f32 %v308, %v334
        %v339 = vmul.f32 %v308, %v335
        %v340 = vadd.f32 %v301, %v338
        %v341 = vadd.f32 %v302, %v339
        %v342 = vld [vmem:[#allocation2] sm:$0x3f]
        %v343 = vld [vmem:[#allocation3] sm:$0x3]
        %345 = vset.pattern.permute.xlu0 14
        %346 = vperm.xlu0 %345, %v343
        %v347 = vpop.permute.xlu0 %346
        %v350 = vcombine.high %v342, %v342
        %v352 = vunpack.c.l.s4 1983009808
        %v353 = vunpack.c.0.s8 %v352
        %v354 = vlaneseq
        %v355 = vshrl.u32 %v354, 7
        %v356 = vsub.s32 %v353, %v355
        %v357 = vrot.slane %v342, %v356
        %v359 = vunpack.c.l.s4 1983009808
        %v360 = vunpack.c.0.s8 %v359
        %v361 = vlaneseq
        %v362 = vshrl.u32 %v361, 7
        %v363 = vsub.s32 %v360, %v362
        %v364 = vrot.slane %v350, %v363
        %v365 = vcombine.high %v357, %v357
        %366 = vrot.lane.b32.xlu0 %v357, 19
        %v367 = vpop.permute.xlu0 %366
        %368 = vrot.lane.b32.xlu0 %v365, 19
        %v369 = vpop.permute.xlu0 %368
        %370 = vrot.lane.b32.xlu0 %v364, 19
        %v371 = vpop.permute.xlu0 %370
        %vm372 = vcmask 154624
        %v373 = vsel %vm372, %v367, %v369
        %v374 = vsel %vm372, %v369, %v371
        %v377 = vmul.f32 %v347, %v373
        %v378 = vmul.f32 %v347, %v374
        %v379 = vadd.f32 %v340, %v377
        %v380 = vadd.f32 %v341, %v378
        %v381 = vld [vmem:[#allocation2] sm:$0x3f]
        %v382 = vld [vmem:[#allocation3] sm:$0x3]
        %384 = vset.pattern.permute.xlu0 21
        %385 = vperm.xlu0 %384, %v382
        %v386 = vpop.permute.xlu0 %385
        %v389 = vcombine.high %v381, %v381
        %v391 = vunpack.c.l.s4 1983009808
        %v392 = vunpack.c.0.s8 %v391
        %v393 = vlaneseq
        %v394 = vshrl.u32 %v393, 7
        %v395 = vsub.s32 %v392, %v394
        %v396 = vrot.slane %v381, %v395
        %v398 = vunpack.c.l.s4 1983009808
        %v399 = vunpack.c.0.s8 %v398
        %v400 = vlaneseq
        %v401 = vshrl.u32 %v400, 7
        %v402 = vsub.s32 %v399, %v401
        %v403 = vrot.slane %v389, %v402
        %v404 = vcombine.high %v396, %v396
        %405 = vrot.lane.b32.xlu0 %v396, 3
        %v406 = vpop.permute.xlu0 %405
        %407 = vrot.lane.b32.xlu0 %v404, 3
        %v408 = vpop.permute.xlu0 %407
        %409 = vrot.lane.b32.xlu0 %v403, 3
        %v410 = vpop.permute.xlu0 %409
        %vm411 = vcmask 23552
        %v412 = vsel %vm411, %v406, %v408
        %v413 = vsel %vm411, %v408, %v410
        %v416 = vmul.f32 %v386, %v412
        %v417 = vmul.f32 %v386, %v413
        %v418 = vadd.f32 %v379, %v416
        %v419 = vadd.f32 %v380, %v417
        %v420 = vld [vmem:[#allocation2 + $0x2] sm:$0x3f]
        %v421 = vld [vmem:[#allocation3] sm:$0x3]
        %423 = vset.pattern.permute.xlu0 28
        %424 = vperm.xlu0 %423, %v421
        %v425 = vpop.permute.xlu0 %424
        %v428 = vcombine.high %v420, %v420
        %v430 = vunpack.c.l.s4 1983009808
        %v431 = vunpack.c.0.s8 %v430
        %v432 = vlaneseq
        %v433 = vshrl.u32 %v432, 7
        %v434 = vsub.s32 %v431, %v433
        %v435 = vrot.slane %v420, %v434
        %v437 = vunpack.c.l.s4 1983009808
        %v438 = vunpack.c.0.s8 %v437
        %v439 = vlaneseq
        %v440 = vshrl.u32 %v439, 7
        %v441 = vsub.s32 %v438, %v440
        %v442 = vrot.slane %v428, %v441
        %v443 = vcombine.high %v435, %v435
        %444 = vrot.lane.b32.xlu0 %v435, 115
        %v445 = vpop.permute.xlu0 %444
        %446 = vrot.lane.b32.xlu0 %v443, 115
        %v447 = vpop.permute.xlu0 %446
        %448 = vrot.lane.b32.xlu0 %v442, 115
        %v449 = vpop.permute.xlu0 %448
        %vm450 = vcmask 941056
        %v451 = vsel %vm450, %v445, %v447
        %v452 = vsel %vm450, %v447, %v449
        %v455 = vmul.f32 %v425, %v451
        %v456 = vmul.f32 %v425, %v452
        %v457 = vadd.f32 %v418, %v455
        %v458 = vadd.f32 %v419, %v456
        %v459 = vld [vmem:[#allocation2 + $0x2] sm:$0x3f]
        %v460 = vld [vmem:[#allocation3] sm:$0x3]
        %462 = vset.pattern.permute.xlu0 35
        %463 = vperm.xlu0 %462, %v460
        %v464 = vpop.permute.xlu0 %463
        %v467 = vcombine.high %v459, %v459
        %v469 = vunpack.c.l.s4 1983009808
        %v470 = vunpack.c.0.s8 %v469
        %v471 = vlaneseq
        %v472 = vshrl.u32 %v471, 7
        %v473 = vsub.s32 %v470, %v472
        %v474 = vrot.slane %v459, %v473
        %v476 = vunpack.c.l.s4 1983009808
        %v477 = vunpack.c.0.s8 %v476
        %v478 = vlaneseq
        %v479 = vshrl.u32 %v478, 7
        %v480 = vsub.s32 %v477, %v479
        %v481 = vrot.slane %v467, %v480
        %v482 = vcombine.high %v474, %v474
        %483 = vrot.lane.b32.xlu0 %v474, 99
        %v484 = vpop.permute.xlu0 %483
        %485 = vrot.lane.b32.xlu0 %v482, 99
        %v486 = vpop.permute.xlu0 %485
        %487 = vrot.lane.b32.xlu0 %v481, 99
        %v488 = vpop.permute.xlu0 %487
        %vm489 = vcmask 809984
        %v490 = vsel %vm489, %v484, %v486
        %v491 = vsel %vm489, %v486, %v488
        %v494 = vmul.f32 %v464, %v490
        %v495 = vmul.f32 %v464, %v491
        %v496 = vadd.f32 %v457, %v494
        %v497 = vadd.f32 %v458, %v495
        %v498 = vld [vmem:[#allocation2 + $0x2] sm:$0x3f]
        %v499 = vld [vmem:[#allocation3] sm:$0x3]
        %501 = vset.pattern.permute.xlu0 42
        %502 = vperm.xlu0 %501, %v499
        %v503 = vpop.permute.xlu0 %502
        %v506 = vcombine.high %v498, %v498
        %v508 = vunpack.c.l.s4 1983009808
        %v509 = vunpack.c.0.s8 %v508
        %v510 = vlaneseq
        %v511 = vshrl.u32 %v510, 7
        %v512 = vsub.s32 %v509, %v511
        %v513 = vrot.slane %v498, %v512
        %v515 = vunpack.c.l.s4 1983009808
        %v516 = vunpack.c.0.s8 %v515
        %v517 = vlaneseq
        %v518 = vshrl.u32 %v517, 7
        %v519 = vsub.s32 %v516, %v518
        %v520 = vrot.slane %v506, %v519
        %v521 = vcombine.high %v513, %v513
        %522 = vrot.lane.b32.xlu0 %v513, 83
        %v523 = vpop.permute.xlu0 %522
        %524 = vrot.lane.b32.xlu0 %v521, 83
        %v525 = vpop.permute.xlu0 %524
        %526 = vrot.lane.b32.xlu0 %v520, 83
        %v527 = vpop.permute.xlu0 %526
        %vm528 = vcmask 678912
        %v529 = vsel %vm528, %v523, %v525
        %v530 = vsel %vm528, %v525, %v527
        %v533 = vmul.f32 %v503, %v529
        %v534 = vmul.f32 %v503, %v530
        %v535 = vadd.f32 %v496, %v533
        %v536 = vadd.f32 %v497, %v534
        %v537 = vld [vmem:[#allocation6] ss:$8 sm:$0x3]
        %v539 = vlaneseq
        %v540 = vshrl.u32 %v539, 7
        %v541 = vsub.s32 0, %v540
        %v542 = vrot.slane %v537, %v541
        %v543 = vlaneseq
        %v544 = vshrl.u32 %v543, 7
        %v545 = vsub.s32 1, %v544
        %v546 = vrot.slane %v537, %v545
        %v549 = vmul.f32 %v535, %v542
        %v550 = vmul.f32 %v536, %v546
        %v551 = vadd.f32 %v549, 0.0
        %v552 = vadd.f32 %v550, 0.0
        %v553 = vld [vmem:[#allocation2] sm:$0x3f]
        %v554 = vld [vmem:[#allocation3] sm:$0x3]
        %556 = vset.pattern.permute.xlu0 1
        %557 = vperm.xlu0 %556, %v554
        %v558 = vpop.permute.xlu0 %557
        %v561 = vcombine.high %v553, %v553
        %v563 = vunpack.c.l.s4 1983009808
        %v564 = vunpack.c.0.s8 %v563
        %v565 = vlaneseq
        %v566 = vshrl.u32 %v565, 7
        %v567 = vsub.s32 %v564, %v566
        %v568 = vrot.slane %v553, %v567
        %v570 = vunpack.c.l.s4 1983009808
        %v571 = vunpack.c.0.s8 %v570
        %v572 = vlaneseq
        %v573 = vshrl.u32 %v572, 7
        %v574 = vsub.s32 %v571, %v573
        %v575 = vrot.slane %v561, %v574
        %v576 = vcombine.high %v568, %v568
        %577 = vrot.lane.b32.xlu0 %v568, 50
        %v578 = vpop.permute.xlu0 %577
        %579 = vrot.lane.b32.xlu0 %v576, 50
        %v580 = vpop.permute.xlu0 %579
        %581 = vrot.lane.b32.xlu0 %v575, 50
        %v582 = vpop.permute.xlu0 %581
        %vm583 = vcmask 408576
        %v584 = vsel %vm583, %v578, %v580
        %v585 = vsel %vm583, %v580, %v582
        %v588 = vmul.f32 %v558, %v584
        %v589 = vmul.f32 %v558, %v585
        %v590 = vadd.f32 %v588, 0.0
        %v591 = vadd.f32 %v589, 0.0
        %v592 = vld [vmem:[#allocation2] sm:$0x3f]
        %v593 = vld [vmem:[#allocation3] sm:$0x3]
        %595 = vset.pattern.permute.xlu0 8
        %596 = vperm.xlu0 %595, %v593
        %v597 = vpop.permute.xlu0 %596
        %v600 = vcombine.high %v592, %v592
        %v602 = vunpack.c.l.s4 1983009808
        %v603 = vunpack.c.0.s8 %v602
        %v604 = vlaneseq
        %v605 = vshrl.u32 %v604, 7
        %v606 = vsub.s32 %v603, %v605
        %v607 = vrot.slane %v592, %v606
        %v609 = vunpack.c.l.s4 1983009808
        %v610 = vunpack.c.0.s8 %v609
        %v611 = vlaneseq
        %v612 = vshrl.u32 %v611, 7
        %v613 = vsub.s32 %v610, %v612
        %v614 = vrot.slane %v600, %v613
        %v615 = vcombine.high %v607, %v607
        %616 = vrot.lane.b32.xlu0 %v607, 34
        %v617 = vpop.permute.xlu0 %616
        %618 = vrot.lane.b32.xlu0 %v615, 34
        %v619 = vpop.permute.xlu0 %618
        %620 = vrot.lane.b32.xlu0 %v614, 34
        %v621 = vpop.permute.xlu0 %620
        %vm622 = vcmask 277504
        %v623 = vsel %vm622, %v617, %v619
        %v624 = vsel %vm622, %v619, %v621
        %v627 = vmul.f32 %v597, %v623
        %v628 = vmul.f32 %v597, %v624
        %v629 = vadd.f32 %v590, %v627
        %v630 = vadd.f32 %v591, %v628
        %v631 = vld [vmem:[#allocation2] sm:$0x3f]
        %v632 = vld [vmem:[#allocation3] sm:$0x3]
        %634 = vset.pattern.permute.xlu0 15
        %635 = vperm.xlu0 %634, %v632
        %v636 = vpop.permute.xlu0 %635
        %v639 = vcombine.high %v631, %v631
        %v641 = vunpack.c.l.s4 1983009808
        %v642 = vunpack.c.0.s8 %v641
        %v643 = vlaneseq
        %v644 = vshrl.u32 %v643, 7
        %v645 = vsub.s32 %v642, %v644
        %v646 = vrot.slane %v631, %v645
        %v648 = vunpack.c.l.s4 1983009808
        %v649 = vunpack.c.0.s8 %v648
        %v650 = vlaneseq
        %v651 = vshrl.u32 %v650, 7
        %v652 = vsub.s32 %v649, %v651
        %v653 = vrot.slane %v639, %v652
        %v654 = vcombine.high %v646, %v646
        %655 = vrot.lane.b32.xlu0 %v646, 18
        %v656 = vpop.permute.xlu0 %655
        %657 = vrot.lane.b32.xlu0 %v654, 18
        %v658 = vpop.permute.xlu0 %657
        %659 = vrot.lane.b32.xlu0 %v653, 18
        %v660 = vpop.permute.xlu0 %659
        %vm661 = vcmask 146432
        %v662 = vsel %vm661, %v656, %v658
        %v663 = vsel %vm661, %v658, %v660
        %v666 = vmul.f32 %v636, %v662
        %v667 = vmul.f32 %v636, %v663
        %v668 = vadd.f32 %v629, %v666
        %v669 = vadd.f32 %v630, %v667
        %v670 = vld [vmem:[#allocation2] sm:$0x3f]
        %v671 = vld [vmem:[#allocation3] sm:$0x3]
        %673 = vset.pattern.permute.xlu0 22
        %674 = vperm.xlu0 %673, %v671
        %v675 = vpop.permute.xlu0 %674
        %v678 = vcombine.high %v670, %v670
        %v680 = vunpack.c.l.s4 1983009808
        %v681 = vunpack.c.0.s8 %v680
        %v682 = vlaneseq
        %v683 = vshrl.u32 %v682, 7
        %v684 = vsub.s32 %v681, %v683
        %v685 = vrot.slane %v670, %v684
        %v687 = vunpack.c.l.s4 1983009808
        %v688 = vunpack.c.0.s8 %v687
        %v689 = vlaneseq
        %v690 = vshrl.u32 %v689, 7
        %v691 = vsub.s32 %v688, %v690
        %v692 = vrot.slane %v678, %v691
        %v693 = vcombine.high %v685, %v685
        %694 = vrot.lane.b32.xlu0 %v685, 2
        %v695 = vpop.permute.xlu0 %694
        %696 = vrot.lane.b32.xlu0 %v693, 2
        %v697 = vpop.permute.xlu0 %696
        %698 = vrot.lane.b32.xlu0 %v692, 2
        %v699 = vpop.permute.xlu0 %698
        %vm700 = vcmask 15360
        %v701 = vsel %vm700, %v695, %v697
        %v702 = vsel %vm700, %v697, %v699
        %v705 = vmul.f32 %v675, %v701
        %v706 = vmul.f32 %v675, %v702
        %v707 = vadd.f32 %v668, %v705
        %v708 = vadd.f32 %v669, %v706
        %v709 = vld [vmem:[#allocation2 + $0x2] sm:$0x3f]
        %v710 = vld [vmem:[#allocation3] sm:$0x3]
        %712 = vset.pattern.permute.xlu0 29
        %713 = vperm.xlu0 %712, %v710
        %v714 = vpop.permute.xlu0 %713
        %v717 = vcombine.high %v709, %v709
        %v719 = vunpack.c.l.s4 1983009808
        %v720 = vunpack.c.0.s8 %v719
        %v721 = vlaneseq
        %v722 = vshrl.u32 %v721, 7
        %v723 = vsub.s32 %v720, %v722
        %v724 = vrot.slane %v709, %v723
        %v726 = vunpack.c.l.s4 1983009808
        %v727 = vunpack.c.0.s8 %v726
        %v728 = vlaneseq
        %v729 = vshrl.u32 %v728, 7
        %v730 = vsub.s32 %v727, %v729
        %v731 = vrot.slane %v717, %v730
        %v732 = vcombine.high %v724, %v724
        %733 = vrot.lane.b32.xlu0 %v724, 114
        %v734 = vpop.permute.xlu0 %733
        %735 = vrot.lane.b32.xlu0 %v732, 114
        %v736 = vpop.permute.xlu0 %735
        %737 = vrot.lane.b32.xlu0 %v731, 114
        %v738 = vpop.permute.xlu0 %737
        %vm739 = vcmask 932864
        %v740 = vsel %vm739, %v734, %v736
        %v741 = vsel %vm739, %v736, %v738
        %v744 = vmul.f32 %v714, %v740
        %v745 = vmul.f32 %v714, %v741
        %v746 = vadd.f32 %v707, %v744
        %v747 = vadd.f32 %v708, %v745
        %v748 = vld [vmem:[#allocation2 + $0x2] sm:$0x3f]
        %v749 = vld [vmem:[#allocation3] sm:$0x3]
        %751 = vset.pattern.permute.xlu0 36
        %752 = vperm.xlu0 %751, %v749
        %v753 = vpop.permute.xlu0 %752
        %v756 = vcombine.high %v748, %v748
        %v758 = vunpack.c.l.s4 1983009808
        %v759 = vunpack.c.0.s8 %v758
        %v760 = vlaneseq
        %v761 = vshrl.u32 %v760, 7
        %v762 = vsub.s32 %v759, %v761
        %v763 = vrot.slane %v748, %v762
        %v765 = vunpack.c.l.s4 1983009808
        %v766 = vunpack.c.0.s8 %v765
        %v767 = vlaneseq
        %v768 = vshrl.u32 %v767, 7
        %v769 = vsub.s32 %v766, %v768
        %v770 = vrot.slane %v756, %v769
        %v771 = vcombine.high %v763, %v763
        %772 = vrot.lane.b32.xlu0 %v763, 98
        %v773 = vpop.permute.xlu0 %772
        %774 = vrot.lane.b32.xlu0 %v771, 98
        %v775 = vpop.permute.xlu0 %774
        %776 = vrot.lane.b32.xlu0 %v770, 98
        %v777 = vpop.permute.xlu0 %776
        %vm778 = vcmask 801792
        %v779 = vsel %vm778, %v773, %v775
        %v780 = vsel %vm778, %v775, %v777
        %v783 = vmul.f32 %v753, %v779
        %v784 = vmul.f32 %v753, %v780
        %v785 = vadd.f32 %v746, %v783
        %v786 = vadd.f32 %v747, %v784
        %v787 = vld [vmem:[#allocation2 + $0x2] sm:$0x3f]
        %v788 = vld [vmem:[#allocation3] sm:$0x3]
        %790 = vset.pattern.permute.xlu0 43
        %791 = vperm.xlu0 %790, %v788
        %v792 = vpop.permute.xlu0 %791
        %v795 = vcombine.high %v787, %v787
        %v797 = vunpack.c.l.s4 1983009808
        %v798 = vunpack.c.0.s8 %v797
        %v799 = vlaneseq
        %v800 = vshrl.u32 %v799, 7
        %v801 = vsub.s32 %v798, %v800
        %v802 = vrot.slane %v787, %v801
        %v804 = vunpack.c.l.s4 1983009808
        %v805 = vunpack.c.0.s8 %v804
        %v806 = vlaneseq
        %v807 = vshrl.u32 %v806, 7
        %v808 = vsub.s32 %v805, %v807
        %v809 = vrot.slane %v795, %v808
        %v810 = vcombine.high %v802, %v802
        %811 = vrot.lane.b32.xlu0 %v802, 82
        %v812 = vpop.permute.xlu0 %811
        %813 = vrot.lane.b32.xlu0 %v810, 82
        %v814 = vpop.permute.xlu0 %813
        %815 = vrot.lane.b32.xlu0 %v809, 82
        %v816 = vpop.permute.xlu0 %815
        %vm817 = vcmask 670720
        %v818 = vsel %vm817, %v812, %v814
        %v819 = vsel %vm817, %v814, %v816
        %v822 = vmul.f32 %v792, %v818
        %v823 = vmul.f32 %v792, %v819
        %v824 = vadd.f32 %v785, %v822
        %v825 = vadd.f32 %v786, %v823
        %s826 = scalar_lea.vmem [#allocation6], 1
        %v827 = vld [vmem:[%s826] ss:$8 sm:$0x3]
        %v829 = vlaneseq
        %v830 = vshrl.u32 %v829, 7
        %v831 = vsub.s32 0, %v830
        %v832 = vrot.slane %v827, %v831
        %v833 = vlaneseq
        %v834 = vshrl.u32 %v833, 7
        %v835 = vsub.s32 1, %v834
        %v836 = vrot.slane %v827, %v835
        %v839 = vmul.f32 %v824, %v832
        %v840 = vmul.f32 %v825, %v836
        %v841 = vadd.f32 %v551, %v839
        %v842 = vadd.f32 %v552, %v840
        %v843 = vld [vmem:[#allocation2] sm:$0x3f]
        %v844 = vld [vmem:[#allocation3] sm:$0x3]
        %846 = vset.pattern.permute.xlu0 2
        %847 = vperm.xlu0 %846, %v844
        %v848 = vpop.permute.xlu0 %847
        %v851 = vcombine.high %v843, %v843
        %v853 = vunpack.c.l.s4 1983009808
        %v854 = vunpack.c.0.s8 %v853
        %v855 = vlaneseq
        %v856 = vshrl.u32 %v855, 7
        %v857 = vsub.s32 %v854, %v856
        %v858 = vrot.slane %v843, %v857
        %v860 = vunpack.c.l.s4 1983009808
        %v861 = vunpack.c.0.s8 %v860
        %v862 = vlaneseq
        %v863 = vshrl.u32 %v862, 7
        %v864 = vsub.s32 %v861, %v863
        %v865 = vrot.slane %v851, %v864
        %v866 = vcombine.high %v858, %v858
        %867 = vrot.lane.b32.xlu0 %v858, 49
        %v868 = vpop.permute.xlu0 %867
        %869 = vrot.lane.b32.xlu0 %v866, 49
        %v870 = vpop.permute.xlu0 %869
        %871 = vrot.lane.b32.xlu0 %v865, 49
        %v872 = vpop.permute.xlu0 %871
        %vm873 = vcmask 400384
        %v874 = vsel %vm873, %v868, %v870
        %v875 = vsel %vm873, %v870, %v872
        %v878 = vmul.f32 %v848, %v874
        %v879 = vmul.f32 %v848, %v875
        %v880 = vadd.f32 %v878, 0.0
        %v881 = vadd.f32 %v879, 0.0
        %v882 = vld [vmem:[#allocation2] sm:$0x3f]
        %v883 = vld [vmem:[#allocation3] sm:$0x3]
        %885 = vset.pattern.permute.xlu0 9
        %886 = vperm.xlu0 %885, %v883
        %v887 = vpop.permute.xlu0 %886
        %v890 = vcombine.high %v882, %v882
        %v892 = vunpack.c.l.s4 1983009808
        %v893 = vunpack.c.0.s8 %v892
        %v894 = vlaneseq
        %v895 = vshrl.u32 %v894, 7
        %v896 = vsub.s32 %v893, %v895
        %v897 = vrot.slane %v882, %v896
        %v899 = vunpack.c.l.s4 1983009808
        %v900 = vunpack.c.0.s8 %v899
        %v901 = vlaneseq
        %v902 = vshrl.u32 %v901, 7
        %v903 = vsub.s32 %v900, %v902
        %v904 = vrot.slane %v890, %v903
        %v905 = vcombine.high %v897, %v897
        %906 = vrot.lane.b32.xlu0 %v897, 33
        %v907 = vpop.permute.xlu0 %906
        %908 = vrot.lane.b32.xlu0 %v905, 33
        %v909 = vpop.permute.xlu0 %908
        %910 = vrot.lane.b32.xlu0 %v904, 33
        %v911 = vpop.permute.xlu0 %910
        %vm912 = vcmask 269312
        %v913 = vsel %vm912, %v907, %v909
        %v914 = vsel %vm912, %v909, %v911
        %v917 = vmul.f32 %v887, %v913
        %v918 = vmul.f32 %v887, %v914
        %v919 = vadd.f32 %v880, %v917
        %v920 = vadd.f32 %v881, %v918
        %v921 = vld [vmem:[#allocation2] sm:$0x3f]
        %v922 = vld [vmem:[#allocation3] sm:$0x3]
        %924 = vset.pattern.permute.xlu0 16
        %925 = vperm.xlu0 %924, %v922
        %v926 = vpop.permute.xlu0 %925
        %v929 = vcombine.high %v921, %v921
        %v931 = vunpack.c.l.s4 1983009808
        %v932 = vunpack.c.0.s8 %v931
        %v933 = vlaneseq
        %v934 = vshrl.u32 %v933, 7
        %v935 = vsub.s32 %v932, %v934
        %v936 = vrot.slane %v921, %v935
        %v938 = vunpack.c.l.s4 1983009808
        %v939 = vunpack.c.0.s8 %v938
        %v940 = vlaneseq
        %v941 = vshrl.u32 %v940, 7
        %v942 = vsub.s32 %v939, %v941
        %v943 = vrot.slane %v929, %v942
        %v944 = vcombine.high %v936, %v936
        %945 = vrot.lane.b32.xlu0 %v936, 17
        %v946 = vpop.permute.xlu0 %945
        %947 = vrot.lane.b32.xlu0 %v944, 17
        %v948 = vpop.permute.xlu0 %947
        %949 = vrot.lane.b32.xlu0 %v943, 17
        %v950 = vpop.permute.xlu0 %949
        %vm951 = vcmask 138240
        %v952 = vsel %vm951, %v946, %v948
        %v953 = vsel %vm951, %v948, %v950
        %v956 = vmul.f32 %v926, %v952
        %v957 = vmul.f32 %v926, %v953
        %v958 = vadd.f32 %v919, %v956
        %v959 = vadd.f32 %v920, %v957
        %v960 = vld [vmem:[#allocation2] sm:$0x3f]
        %v961 = vld [vmem:[#allocation3] sm:$0x3]
        %963 = vset.pattern.permute.xlu0 23
        %964 = vperm.xlu0 %963, %v961
        %v965 = vpop.permute.xlu0 %964
        %v968 = vcombine.high %v960, %v960
        %v970 = vunpack.c.l.s4 1983009808
        %v971 = vunpack.c.0.s8 %v970
        %v972 = vlaneseq
        %v973 = vshrl.u32 %v972, 7
        %v974 = vsub.s32 %v971, %v973
        %v975 = vrot.slane %v960, %v974
        %v977 = vunpack.c.l.s4 1983009808
        %v978 = vunpack.c.0.s8 %v977
        %v979 = vlaneseq
        %v980 = vshrl.u32 %v979, 7
        %v981 = vsub.s32 %v978, %v980
        %v982 = vrot.slane %v968, %v981
        %v983 = vcombine.high %v975, %v975
        %984 = vrot.lane.b32.xlu0 %v975, 1
        %v985 = vpop.permute.xlu0 %984
        %986 = vrot.lane.b32.xlu0 %v983, 1
        %v987 = vpop.permute.xlu0 %986
        %988 = vrot.lane.b32.xlu0 %v982, 1
        %v989 = vpop.permute.xlu0 %988
        %vm990 = vcmask 7168
        %v991 = vsel %vm990, %v985, %v987
        %v992 = vsel %vm990, %v987, %v989
        %v995 = vmul.f32 %v965, %v991
        %v996 = vmul.f32 %v965, %v992
        %v997 = vadd.f32 %v958, %v995
        %v998 = vadd.f32 %v959, %v996
        %v999 = vld [vmem:[#allocation2 + $0x2] sm:$0x3f]
        %v1000 = vld [vmem:[#allocation3] sm:$0x3]
        %1002 = vset.pattern.permute.xlu0 30
        %1003 = vperm.xlu0 %1002, %v1000
        %v1004 = vpop.permute.xlu0 %1003
        %v1007 = vcombine.high %v999, %v999
        %v1009 = vunpack.c.l.s4 1983009808
        %v1010 = vunpack.c.0.s8 %v1009
        %v1011 = vlaneseq
        %v1012 = vshrl.u32 %v1011, 7
        %v1013 = vsub.s32 %v1010, %v1012
        %v1014 = vrot.slane %v999, %v1013
        %v1016 = vunpack.c.l.s4 1983009808
        %v1017 = vunpack.c.0.s8 %v1016
        %v1018 = vlaneseq
        %v1019 = vshrl.u32 %v1018, 7
        %v1020 = vsub.s32 %v1017, %v1019
        %v1021 = vrot.slane %v1007, %v1020
        %v1022 = vcombine.high %v1014, %v1014
        %1023 = vrot.lane.b32.xlu0 %v1014, 113
        %v1024 = vpop.permute.xlu0 %1023
        %1025 = vrot.lane.b32.xlu0 %v1022, 113
        %v1026 = vpop.permute.xlu0 %1025
        %1027 = vrot.lane.b32.xlu0 %v1021, 113
        %v1028 = vpop.permute.xlu0 %1027
        %vm1029 = vcmask 924672
        %v1030 = vsel %vm1029, %v1024, %v1026
        %v1031 = vsel %vm1029, %v1026, %v1028
        %v1034 = vmul.f32 %v1004, %v1030
        %v1035 = vmul.f32 %v1004, %v1031
        %v1036 = vadd.f32 %v997, %v1034
        %v1037 = vadd.f32 %v998, %v1035
        %v1038 = vld [vmem:[#allocation2 + $0x2] sm:$0x3f]
        %v1039 = vld [vmem:[#allocation3] sm:$0x3]
        %1041 = vset.pattern.permute.xlu0 37
        %1042 = vperm.xlu0 %1041, %v1039
        %v1043 = vpop.permute.xlu0 %1042
        %v1046 = vcombine.high %v1038, %v1038
        %v1048 = vunpack.c.l.s4 1983009808
        %v1049 = vunpack.c.0.s8 %v1048
        %v1050 = vlaneseq
        %v1051 = vshrl.u32 %v1050, 7
        %v1052 = vsub.s32 %v1049, %v1051
        %v1053 = vrot.slane %v1038, %v1052
        %v1055 = vunpack.c.l.s4 1983009808
        %v1056 = vunpack.c.0.s8 %v1055
        %v1057 = vlaneseq
        %v1058 = vshrl.u32 %v1057, 7
        %v1059 = vsub.s32 %v1056, %v1058
        %v1060 = vrot.slane %v1046, %v1059
        %v1061 = vcombine.high %v1053, %v1053
        %1062 = vrot.lane.b32.xlu0 %v1053, 97
        %v1063 = vpop.permute.xlu0 %1062
        %1064 = vrot.lane.b32.xlu0 %v1061, 97
        %v1065 = vpop.permute.xlu0 %1064
        %1066 = vrot.lane.b32.xlu0 %v1060, 97
        %v1067 = vpop.permute.xlu0 %1066
        %vm1068 = vcmask 793600
        %v1069 = vsel %vm1068, %v1063, %v1065
        %v1070 = vsel %vm1068, %v1065, %v1067
        %v1073 = vmul.f32 %v1043, %v1069
        %v1074 = vmul.f32 %v1043, %v1070
        %v1075 = vadd.f32 %v1036, %v1073
        %v1076 = vadd.f32 %v1037, %v1074
        %v1077 = vld [vmem:[#allocation2 + $0x2] sm:$0x3f]
        %v1078 = vld [vmem:[#allocation3] sm:$0x3]
        %1080 = vset.pattern.permute.xlu0 44
        %1081 = vperm.xlu0 %1080, %v1078
        %v1082 = vpop.permute.xlu0 %1081
        %v1085 = vcombine.high %v1077, %v1077
        %v1087 = vunpack.c.l.s4 1983009808
        %v1088 = vunpack.c.0.s8 %v1087
        %v1089 = vlaneseq
        %v1090 = vshrl.u32 %v1089, 7
        %v1091 = vsub.s32 %v1088, %v1090
        %v1092 = vrot.slane %v1077, %v1091
        %v1094 = vunpack.c.l.s4 1983009808
        %v1095 = vunpack.c.0.s8 %v1094
        %v1096 = vlaneseq
        %v1097 = vshrl.u32 %v1096, 7
        %v1098 = vsub.s32 %v1095, %v1097
        %v1099 = vrot.slane %v1085, %v1098
        %v1100 = vcombine.high %v1092, %v1092
        %1101 = vrot.lane.b32.xlu0 %v1092, 81
        %v1102 = vpop.permute.xlu0 %1101
        %1103 = vrot.lane.b32.xlu0 %v1100, 81
        %v1104 = vpop.permute.xlu0 %1103
        %1105 = vrot.lane.b32.xlu0 %v1099, 81
        %v1106 = vpop.permute.xlu0 %1105
        %vm1107 = vcmask 662528
        %v1108 = vsel %vm1107, %v1102, %v1104
        %v1109 = vsel %vm1107, %v1104, %v1106
        %v1112 = vmul.f32 %v1082, %v1108
        %v1113 = vmul.f32 %v1082, %v1109
        %v1114 = vadd.f32 %v1075, %v1112
        %v1115 = vadd.f32 %v1076, %v1113
        %s1116 = scalar_lea.vmem [#allocation6], 2
        %v1117 = vld [vmem:[%s1116] ss:$8 sm:$0x3]
        %v1119 = vlaneseq
        %v1120 = vshrl.u32 %v1119, 7
        %v1121 = vsub.s32 0, %v1120
        %v1122 = vrot.slane %v1117, %v1121
        %v1123 = vlaneseq
        %v1124 = vshrl.u32 %v1123, 7
        %v1125 = vsub.s32 1, %v1124
        %v1126 = vrot.slane %v1117, %v1125
        %v1129 = vmul.f32 %v1114, %v1122
        %v1130 = vmul.f32 %v1115, %v1126
        %v1131 = vadd.f32 %v841, %v1129
        %v1132 = vadd.f32 %v842, %v1130
        %v1133 = vld [vmem:[#allocation2] sm:$0x3f]
        %v1134 = vld [vmem:[#allocation3] sm:$0x3]
        %1136 = vset.pattern.permute.xlu0 3
        %1137 = vperm.xlu0 %1136, %v1134
        %v1138 = vpop.permute.xlu0 %1137
        %v1141 = vcombine.high %v1133, %v1133
        %v1143 = vunpack.c.l.s4 1983009808
        %v1144 = vunpack.c.0.s8 %v1143
        %v1145 = vlaneseq
        %v1146 = vshrl.u32 %v1145, 7
        %v1147 = vsub.s32 %v1144, %v1146
        %v1148 = vrot.slane %v1133, %v1147
        %v1150 = vunpack.c.l.s4 1983009808
        %v1151 = vunpack.c.0.s8 %v1150
        %v1152 = vlaneseq
        %v1153 = vshrl.u32 %v1152, 7
        %v1154 = vsub.s32 %v1151, %v1153
        %v1155 = vrot.slane %v1141, %v1154
        %v1156 = vcombine.high %v1148, %v1148
        %1157 = vrot.lane.b32.xlu0 %v1148, 48
        %v1158 = vpop.permute.xlu0 %1157
        %1159 = vrot.lane.b32.xlu0 %v1156, 48
        %v1160 = vpop.permute.xlu0 %1159
        %1161 = vrot.lane.b32.xlu0 %v1155, 48
        %v1162 = vpop.permute.xlu0 %1161
        %vm1163 = vcmask 392192
        %v1164 = vsel %vm1163, %v1158, %v1160
        %v1165 = vsel %vm1163, %v1160, %v1162
        %v1168 = vmul.f32 %v1138, %v1164
        %v1169 = vmul.f32 %v1138, %v1165
        %v1170 = vadd.f32 %v1168, 0.0
        %v1171 = vadd.f32 %v1169, 0.0
        %v1172 = vld [vmem:[#allocation2] sm:$0x3f]
        %v1173 = vld [vmem:[#allocation3] sm:$0x3]
        %1175 = vset.pattern.permute.xlu0 10
        %1176 = vperm.xlu0 %1175, %v1173
        %v1177 = vpop.permute.xlu0 %1176
        %v1180 = vcombine.high %v1172, %v1172
        %v1182 = vunpack.c.l.s4 1983009808
        %v1183 = vunpack.c.0.s8 %v1182
        %v1184 = vlaneseq
        %v1185 = vshrl.u32 %v1184, 7
        %v1186 = vsub.s32 %v1183, %v1185
        %v1187 = vrot.slane %v1172, %v1186
        %v1189 = vunpack.c.l.s4 1983009808
        %v1190 = vunpack.c.0.s8 %v1189
        %v1191 = vlaneseq
        %v1192 = vshrl.u32 %v1191, 7
        %v1193 = vsub.s32 %v1190, %v1192
        %v1194 = vrot.slane %v1180, %v1193
        %v1195 = vcombine.high %v1187, %v1187
        %1196 = vrot.lane.b32.xlu0 %v1187, 32
        %v1197 = vpop.permute.xlu0 %1196
        %1198 = vrot.lane.b32.xlu0 %v1195, 32
        %v1199 = vpop.permute.xlu0 %1198
        %1200 = vrot.lane.b32.xlu0 %v1194, 32
        %v1201 = vpop.permute.xlu0 %1200
        %vm1202 = vcmask 261120
        %v1203 = vsel %vm1202, %v1197, %v1199
        %v1204 = vsel %vm1202, %v1199, %v1201
        %v1207 = vmul.f32 %v1177, %v1203
        %v1208 = vmul.f32 %v1177, %v1204
        %v1209 = vadd.f32 %v1170, %v1207
        %v1210 = vadd.f32 %v1171, %v1208
        %v1211 = vld [vmem:[#allocation2] sm:$0x3f]
        %v1212 = vld [vmem:[#allocation3] sm:$0x3]
        %1214 = vset.pattern.permute.xlu0 17
        %1215 = vperm.xlu0 %1214, %v1212
        %v1216 = vpop.permute.xlu0 %1215
        %v1219 = vcombine.high %v1211, %v1211
        %v1221 = vunpack.c.l.s4 1983009808
        %v1222 = vunpack.c.0.s8 %v1221
        %v1223 = vlaneseq
        %v1224 = vshrl.u32 %v1223, 7
        %v1225 = vsub.s32 %v1222, %v1224
        %v1226 = vrot.slane %v1211, %v1225
        %v1228 = vunpack.c.l.s4 1983009808
        %v1229 = vunpack.c.0.s8 %v1228
        %v1230 = vlaneseq
        %v1231 = vshrl.u32 %v1230, 7
        %v1232 = vsub.s32 %v1229, %v1231
        %v1233 = vrot.slane %v1219, %v1232
        %v1234 = vcombine.high %v1226, %v1226
        %1235 = vrot.lane.b32.xlu0 %v1226, 16
        %v1236 = vpop.permute.xlu0 %1235
        %1237 = vrot.lane.b32.xlu0 %v1234, 16
        %v1238 = vpop.permute.xlu0 %1237
        %1239 = vrot.lane.b32.xlu0 %v1233, 16
        %v1240 = vpop.permute.xlu0 %1239
        %vm1241 = vcmask 130048
        %v1242 = vsel %vm1241, %v1236, %v1238
        %v1243 = vsel %vm1241, %v1238, %v1240
        %v1246 = vmul.f32 %v1216, %v1242
        %v1247 = vmul.f32 %v1216, %v1243
        %v1248 = vadd.f32 %v1209, %v1246
        %v1249 = vadd.f32 %v1210, %v1247
        %v1250 = vld [vmem:[#allocation2 + $0x2] sm:$0xf]
        %v1251 = vld [vmem:[#allocation3] sm:$0x3]
        %1253 = vset.pattern.permute.xlu0 24
        %1254 = vperm.xlu0 %1253, %v1251
        %v1255 = vpop.permute.xlu0 %1254
        %v1259 = vunpack.c.l.s4 1983009808
        %v1260 = vunpack.c.0.s8 %v1259
        %v1261 = vlaneseq
        %v1262 = vshrl.u32 %v1261, 7
        %v1263 = vsub.s32 %v1260, %v1262
        %v1264 = vrot.slane %v1250, %v1263
        %v1265 = vcombine.high %v1264, %v1264
        %v1268 = vmul.f32 %v1255, %v1264
        %v1269 = vmul.f32 %v1255, %v1265
        %v1270 = vadd.f32 %v1248, %v1268
        %v1271 = vadd.f32 %v1249, %v1269
        %v1272 = vld [vmem:[#allocation2 + $0x2] sm:$0x3f]
        %v1273 = vld [vmem:[#allocation3] sm:$0x3]
        %1275 = vset.pattern.permute.xlu0 31
        %1276 = vperm.xlu0 %1275, %v1273
        %v1277 = vpop.permute.xlu0 %1276
        %v1280 = vcombine.high %v1272, %v1272
        %v1282 = vunpack.c.l.s4 1983009808
        %v1283 = vunpack.c.0.s8 %v1282
        %v1284 = vlaneseq
        %v1285 = vshrl.u32 %v1284, 7
        %v1286 = vsub.s32 %v1283, %v1285
        %v1287 = vrot.slane %v1272, %v1286
        %v1289 = vunpack.c.l.s4 1983009808
        %v1290 = vunpack.c.0.s8 %v1289
        %v1291 = vlaneseq
        %v1292 = vshrl.u32 %v1291, 7
        %v1293 = vsub.s32 %v1290, %v1292
        %v1294 = vrot.slane %v1280, %v1293
        %v1295 = vcombine.high %v1287, %v1287
        %1296 = vrot.lane.b32.xlu0 %v1287, 112
        %v1297 = vpop.permute.xlu0 %1296
        %1298 = vrot.lane.b32.xlu0 %v1295, 112
        %v1299 = vpop.permute.xlu0 %1298
        %1300 = vrot.lane.b32.xlu0 %v1294, 112
        %v1301 = vpop.permute.xlu0 %1300
        %vm1302 = vcmask 916480
        %v1303 = vsel %vm1302, %v1297, %v1299
        %v1304 = vsel %vm1302, %v1299, %v1301
        %v1307 = vmul.f32 %v1277, %v1303
        %v1308 = vmul.f32 %v1277, %v1304
        %v1309 = vadd.f32 %v1270, %v1307
        %v1310 = vadd.f32 %v1271, %v1308
        %v1311 = vld [vmem:[#allocation2 + $0x2] sm:$0x3f]
        %v1312 = vld [vmem:[#allocation3] sm:$0x3]
        %1314 = vset.pattern.permute.xlu0 38
        %1315 = vperm.xlu0 %1314, %v1312
        %v1316 = vpop.permute.xlu0 %1315
        %v1319 = vcombine.high %v1311, %v1311
        %v1321 = vunpack.c.l.s4 1983009808
        %v1322 = vunpack.c.0.s8 %v1321
        %v1323 = vlaneseq
        %v1324 = vshrl.u32 %v1323, 7
        %v1325 = vsub.s32 %v1322, %v1324
        %v1326 = vrot.slane %v1311, %v1325
        %v1328 = vunpack.c.l.s4 1983009808
        %v1329 = vunpack.c.0.s8 %v1328
        %v1330 = vlaneseq
        %v1331 = vshrl.u32 %v1330, 7
        %v1332 = vsub.s32 %v1329, %v1331
        %v1333 = vrot.slane %v1319, %v1332
        %v1334 = vcombine.high %v1326, %v1326
        %1335 = vrot.lane.b32.xlu0 %v1326, 96
        %v1336 = vpop.permute.xlu0 %1335
        %1337 = vrot.lane.b32.xlu0 %v1334, 96
        %v1338 = vpop.permute.xlu0 %1337
        %1339 = vrot.lane.b32.xlu0 %v1333, 96
        %v1340 = vpop.permute.xlu0 %1339
        %vm1341 = vcmask 785408
        %v1342 = vsel %vm1341, %v1336, %v1338
        %v1343 = vsel %vm1341, %v1338, %v1340
        %v1346 = vmul.f32 %v1316, %v1342
        %v1347 = vmul.f32 %v1316, %v1343
        %v1348 = vadd.f32 %v1309, %v1346
        %v1349 = vadd.f32 %v1310, %v1347
        %v1350 = vld [vmem:[#allocation2 + $0x2] sm:$0x3f]
        %v1351 = vld [vmem:[#allocation3] sm:$0x3]
        %1353 = vset.pattern.permute.xlu0 45
        %1354 = vperm.xlu0 %1353, %v1351
        %v1355 = vpop.permute.xlu0 %1354
        %v1358 = vcombine.high %v1350, %v1350
        %v1360 = vunpack.c.l.s4 1983009808
        %v1361 = vunpack.c.0.s8 %v1360
        %v1362 = vlaneseq
        %v1363 = vshrl.u32 %v1362, 7
        %v1364 = vsub.s32 %v1361, %v1363
        %v1365 = vrot.slane %v1350, %v1364
        %v1367 = vunpack.c.l.s4 1983009808
        %v1368 = vunpack.c.0.s8 %v1367
        %v1369 = vlaneseq
        %v1370 = vshrl.u32 %v1369, 7
        %v1371 = vsub.s32 %v1368, %v1370
        %v1372 = vrot.slane %v1358, %v1371
        %v1373 = vcombine.high %v1365, %v1365
        %1374 = vrot.lane.b32.xlu0 %v1365, 80
        %v1375 = vpop.permute.xlu0 %1374
        %1376 = vrot.lane.b32.xlu0 %v1373, 80
        %v1377 = vpop.permute.xlu0 %1376
        %1378 = vrot.lane.b32.xlu0 %v1372, 80
        %v1379 = vpop.permute.xlu0 %1378
        %vm1380 = vcmask 654336
        %v1381 = vsel %vm1380, %v1375, %v1377
        %v1382 = vsel %vm1380, %v1377, %v1379
        %v1385 = vmul.f32 %v1355, %v1381
        %v1386 = vmul.f32 %v1355, %v1382
        %v1387 = vadd.f32 %v1348, %v1385
        %v1388 = vadd.f32 %v1349, %v1386
        %s1389 = scalar_lea.vmem [#allocation6], 3
        %v1390 = vld [vmem:[%s1389] ss:$8 sm:$0x3]
        %v1392 = vlaneseq
        %v1393 = vshrl.u32 %v1392, 7
        %v1394 = vsub.s32 0, %v1393
        %v1395 = vrot.slane %v1390, %v1394
        %v1396 = vlaneseq
        %v1397 = vshrl.u32 %v1396, 7
        %v1398 = vsub.s32 1, %v1397
        %v1399 = vrot.slane %v1390, %v1398
        %v1402 = vmul.f32 %v1387, %v1395
        %v1403 = vmul.f32 %v1388, %v1399
        %v1404 = vadd.f32 %v1131, %v1402
        %v1405 = vadd.f32 %v1132, %v1403
        %v1406 = vld [vmem:[#allocation2] sm:$0x3f]
        %v1407 = vld [vmem:[#allocation3] sm:$0x3]
        %1409 = vset.pattern.permute.xlu0 4
        %1410 = vperm.xlu0 %1409, %v1407
        %v1411 = vpop.permute.xlu0 %1410
        %v1414 = vcombine.high %v1406, %v1406
        %v1416 = vunpack.c.l.s4 1983009808
        %v1417 = vunpack.c.0.s8 %v1416
        %v1418 = vlaneseq
        %v1419 = vshrl.u32 %v1418, 7
        %v1420 = vsub.s32 %v1417, %v1419
        %v1421 = vrot.slane %v1406, %v1420
        %v1423 = vunpack.c.l.s4 1983009808
        %v1424 = vunpack.c.0.s8 %v1423
        %v1425 = vlaneseq
        %v1426 = vshrl.u32 %v1425, 7
        %v1427 = vsub.s32 %v1424, %v1426
        %v1428 = vrot.slane %v1414, %v1427
        %v1429 = vcombine.high %v1421, %v1421
        %1430 = vrot.lane.b32.xlu0 %v1421, 47
        %v1431 = vpop.permute.xlu0 %1430
        %1432 = vrot.lane.b32.xlu0 %v1429, 47
        %v1433 = vpop.permute.xlu0 %1432
        %1434 = vrot.lane.b32.xlu0 %v1428, 47
        %v1435 = vpop.permute.xlu0 %1434
        %vm1436 = vcmask 384000
        %v1437 = vsel %vm1436, %v1431, %v1433
        %v1438 = vsel %vm1436, %v1433, %v1435
        %v1441 = vmul.f32 %v1411, %v1437
        %v1442 = vmul.f32 %v1411, %v1438
        %v1443 = vadd.f32 %v1441, 0.0
        %v1444 = vadd.f32 %v1442, 0.0
        %v1445 = vld [vmem:[#allocation2] sm:$0x3f]
        %v1446 = vld [vmem:[#allocation3] sm:$0x3]
        %1448 = vset.pattern.permute.xlu0 11
        %1449 = vperm.xlu0 %1448, %v1446
        %v1450 = vpop.permute.xlu0 %1449
        %v1453 = vcombine.high %v1445, %v1445
        %v1455 = vunpack.c.l.s4 1983009808
        %v1456 = vunpack.c.0.s8 %v1455
        %v1457 = vlaneseq
        %v1458 = vshrl.u32 %v1457, 7
        %v1459 = vsub.s32 %v1456, %v1458
        %v1460 = vrot.slane %v1445, %v1459
        %v1462 = vunpack.c.l.s4 1983009808
        %v1463 = vunpack.c.0.s8 %v1462
        %v1464 = vlaneseq
        %v1465 = vshrl.u32 %v1464, 7
        %v1466 = vsub.s32 %v1463, %v1465
        %v1467 = vrot.slane %v1453, %v1466
        %v1468 = vcombine.high %v1460, %v1460
        %1469 = vrot.lane.b32.xlu0 %v1460, 31
        %v1470 = vpop.permute.xlu0 %1469
        %1471 = vrot.lane.b32.xlu0 %v1468, 31
        %v1472 = vpop.permute.xlu0 %1471
        %1473 = vrot.lane.b32.xlu0 %v1467, 31
        %v1474 = vpop.permute.xlu0 %1473
        %vm1475 = vcmask 252928
        %v1476 = vsel %vm1475, %v1470, %v1472
        %v1477 = vsel %vm1475, %v1472, %v1474
        %v1480 = vmul.f32 %v1450, %v1476
        %v1481 = vmul.f32 %v1450, %v1477
        %v1482 = vadd.f32 %v1443, %v1480
        %v1483 = vadd.f32 %v1444, %v1481
        %v1484 = vld [vmem:[#allocation2] sm:$0x3f]
        %v1485 = vld [vmem:[#allocation3] sm:$0x3]
        %1487 = vset.pattern.permute.xlu0 18
        %1488 = vperm.xlu0 %1487, %v1485
        %v1489 = vpop.permute.xlu0 %1488
        %v1492 = vcombine.high %v1484, %v1484
        %v1494 = vunpack.c.l.s4 1983009808
        %v1495 = vunpack.c.0.s8 %v1494
        %v1496 = vlaneseq
        %v1497 = vshrl.u32 %v1496, 7
        %v1498 = vsub.s32 %v1495, %v1497
        %v1499 = vrot.slane %v1484, %v1498
        %v1501 = vunpack.c.l.s4 1983009808
        %v1502 = vunpack.c.0.s8 %v1501
        %v1503 = vlaneseq
        %v1504 = vshrl.u32 %v1503, 7
        %v1505 = vsub.s32 %v1502, %v1504
        %v1506 = vrot.slane %v1492, %v1505
        %v1507 = vcombine.high %v1499, %v1499
        %1508 = vrot.lane.b32.xlu0 %v1499, 15
        %v1509 = vpop.permute.xlu0 %1508
        %1510 = vrot.lane.b32.xlu0 %v1507, 15
        %v1511 = vpop.permute.xlu0 %1510
        %1512 = vrot.lane.b32.xlu0 %v1506, 15
        %v1513 = vpop.permute.xlu0 %1512
        %vm1514 = vcmask 121856
        %v1515 = vsel %vm1514, %v1509, %v1511
        %v1516 = vsel %vm1514, %v1511, %v1513
        %v1519 = vmul.f32 %v1489, %v1515
        %v1520 = vmul.f32 %v1489, %v1516
        %v1521 = vadd.f32 %v1482, %v1519
        %v1522 = vadd.f32 %v1483, %v1520
        %v1523 = vld [vmem:[#allocation2 + $0x2] sm:$0x3f]
        %v1524 = vld [vmem:[#allocation3] sm:$0x3]
        %1526 = vset.pattern.permute.xlu0 25
        %1527 = vperm.xlu0 %1526, %v1524
        %v1528 = vpop.permute.xlu0 %1527
        %v1531 = vcombine.high %v1523, %v1523
        %v1533 = vunpack.c.l.s4 1983009808
        %v1534 = vunpack.c.0.s8 %v1533
        %v1535 = vlaneseq
        %v1536 = vshrl.u32 %v1535, 7
        %v1537 = vsub.s32 %v1534, %v1536
        %v1538 = vrot.slane %v1523, %v1537
        %v1540 = vunpack.c.l.s4 1983009808
        %v1541 = vunpack.c.0.s8 %v1540
        %v1542 = vlaneseq
        %v1543 = vshrl.u32 %v1542, 7
        %v1544 = vsub.s32 %v1541, %v1543
        %v1545 = vrot.slane %v1531, %v1544
        %v1546 = vcombine.high %v1538, %v1538
        %1547 = vrot.lane.b32.xlu0 %v1538, 127
        %v1548 = vpop.permute.xlu0 %1547
        %1549 = vrot.lane.b32.xlu0 %v1546, 127
        %v1550 = vpop.permute.xlu0 %1549
        %1551 = vrot.lane.b32.xlu0 %v1545, 127
        %v1552 = vpop.permute.xlu0 %1551
        %vm1553 = vcmask 1039360
        %v1554 = vsel %vm1553, %v1548, %v1550
        %v1555 = vsel %vm1553, %v1550, %v1552
        %v1558 = vmul.f32 %v1528, %v1554
        %v1559 = vmul.f32 %v1528, %v1555
        %v1560 = vadd.f32 %v1521, %v1558
        %v1561 = vadd.f32 %v1522, %v1559
        %v1562 = vld [vmem:[#allocation2 + $0x2] sm:$0x3f]
        %v1563 = vld [vmem:[#allocation3] sm:$0x3]
        %1565 = vset.pattern.permute.xlu0 32
        %1566 = vperm.xlu0 %1565, %v1563
        %v1567 = vpop.permute.xlu0 %1566
        %v1570 = vcombine.high %v1562, %v1562
        %v1572 = vunpack.c.l.s4 1983009808
        %v1573 = vunpack.c.0.s8 %v1572
        %v1574 = vlaneseq
        %v1575 = vshrl.u32 %v1574, 7
        %v1576 = vsub.s32 %v1573, %v1575
        %v1577 = vrot.slane %v1562, %v1576
        %v1579 = vunpack.c.l.s4 1983009808
        %v1580 = vunpack.c.0.s8 %v1579
        %v1581 = vlaneseq
        %v1582 = vshrl.u32 %v1581, 7
        %v1583 = vsub.s32 %v1580, %v1582
        %v1584 = vrot.slane %v1570, %v1583
        %v1585 = vcombine.high %v1577, %v1577
        %1586 = vrot.lane.b32.xlu0 %v1577, 111
        %v1587 = vpop.permute.xlu0 %1586
        %1588 = vrot.lane.b32.xlu0 %v1585, 111
        %v1589 = vpop.permute.xlu0 %1588
        %1590 = vrot.lane.b32.xlu0 %v1584, 111
        %v1591 = vpop.permute.xlu0 %1590
        %vm1592 = vcmask 908288
        %v1593 = vsel %vm1592, %v1587, %v1589
        %v1594 = vsel %vm1592, %v1589, %v1591
        %v1597 = vmul.f32 %v1567, %v1593
        %v1598 = vmul.f32 %v1567, %v1594
        %v1599 = vadd.f32 %v1560, %v1597
        %v1600 = vadd.f32 %v1561, %v1598
        %v1601 = vld [vmem:[#allocation2 + $0x2] sm:$0x3f]
        %v1602 = vld [vmem:[#allocation3] sm:$0x3]
        %1604 = vset.pattern.permute.xlu0 39
        %1605 = vperm.xlu0 %1604, %v1602
        %v1606 = vpop.permute.xlu0 %1605
        %v1609 = vcombine.high %v1601, %v1601
        %v1611 = vunpack.c.l.s4 1983009808
        %v1612 = vunpack.c.0.s8 %v1611
        %v1613 = vlaneseq
        %v1614 = vshrl.u32 %v1613, 7
        %v1615 = vsub.s32 %v1612, %v1614
        %v1616 = vrot.slane %v1601, %v1615
        %v1618 = vunpack.c.l.s4 1983009808
        %v1619 = vunpack.c.0.s8 %v1618
        %v1620 = vlaneseq
        %v1621 = vshrl.u32 %v1620, 7
        %v1622 = vsub.s32 %v1619, %v1621
        %v1623 = vrot.slane %v1609, %v1622
        %v1624 = vcombine.high %v1616, %v1616
        %1625 = vrot.lane.b32.xlu0 %v1616, 95
        %v1626 = vpop.permute.xlu0 %1625
        %1627 = vrot.lane.b32.xlu0 %v1624, 95
        %v1628 = vpop.permute.xlu0 %1627
        %1629 = vrot.lane.b32.xlu0 %v1623, 95
        %v1630 = vpop.permute.xlu0 %1629
        %vm1631 = vcmask 777216
        %v1632 = vsel %vm1631, %v1626, %v1628
        %v1633 = vsel %vm1631, %v1628, %v1630
        %v1636 = vmul.f32 %v1606, %v1632
        %v1637 = vmul.f32 %v1606, %v1633
        %v1638 = vadd.f32 %v1599, %v1636
        %v1639 = vadd.f32 %v1600, %v1637
        %v1640 = vld [vmem:[#allocation2 + $0x2] sm:$0x3f]
        %v1641 = vld [vmem:[#allocation3] sm:$0x3]
        %1643 = vset.pattern.permute.xlu0 46
        %1644 = vperm.xlu0 %1643, %v1641
        %v1645 = vpop.permute.xlu0 %1644
        %v1648 = vcombine.high %v1640, %v1640
        %v1650 = vunpack.c.l.s4 1983009808
        %v1651 = vunpack.c.0.s8 %v1650
        %v1652 = vlaneseq
        %v1653 = vshrl.u32 %v1652, 7
        %v1654 = vsub.s32 %v1651, %v1653
        %v1655 = vrot.slane %v1640, %v1654
        %v1657 = vunpack.c.l.s4 1983009808
        %v1658 = vunpack.c.0.s8 %v1657
        %v1659 = vlaneseq
        %v1660 = vshrl.u32 %v1659, 7
        %v1661 = vsub.s32 %v1658, %v1660
        %v1662 = vrot.slane %v1648, %v1661
        %v1663 = vcombine.high %v1655, %v1655
        %1664 = vrot.lane.b32.xlu0 %v1655, 79
        %v1665 = vpop.permute.xlu0 %1664
        %1666 = vrot.lane.b32.xlu0 %v1663, 79
        %v1667 = vpop.permute.xlu0 %1666
        %1668 = vrot.lane.b32.xlu0 %v1662, 79
        %v1669 = vpop.permute.xlu0 %1668
        %vm1670 = vcmask 646144
        %v1671 = vsel %vm1670, %v1665, %v1667
        %v1672 = vsel %vm1670, %v1667, %v1669
        %v1675 = vmul.f32 %v1645, %v1671
        %v1676 = vmul.f32 %v1645, %v1672
        %v1677 = vadd.f32 %v1638, %v1675
        %v1678 = vadd.f32 %v1639, %v1676
        %s1679 = scalar_lea.vmem [#allocation6], 4
        %v1680 = vld [vmem:[%s1679] ss:$8 sm:$0x3]
        %v1682 = vlaneseq
        %v1683 = vshrl.u32 %v1682, 7
        %v1684 = vsub.s32 0, %v1683
        %v1685 = vrot.slane %v1680, %v1684
        %v1686 = vlaneseq
        %v1687 = vshrl.u32 %v1686, 7
        %v1688 = vsub.s32 1, %v1687
        %v1689 = vrot.slane %v1680, %v1688
        %v1692 = vmul.f32 %v1677, %v1685
        %v1693 = vmul.f32 %v1678, %v1689
        %v1694 = vadd.f32 %v1404, %v1692
        %v1695 = vadd.f32 %v1405, %v1693
        %v1696 = vld [vmem:[#allocation2] sm:$0x3f]
        %v1697 = vld [vmem:[#allocation3] sm:$0x3]
        %1699 = vset.pattern.permute.xlu0 5
        %1700 = vperm.xlu0 %1699, %v1697
        %v1701 = vpop.permute.xlu0 %1700
        %v1704 = vcombine.high %v1696, %v1696
        %v1706 = vunpack.c.l.s4 1983009808
        %v1707 = vunpack.c.0.s8 %v1706
        %v1708 = vlaneseq
        %v1709 = vshrl.u32 %v1708, 7
        %v1710 = vsub.s32 %v1707, %v1709
        %v1711 = vrot.slane %v1696, %v1710
        %v1713 = vunpack.c.l.s4 1983009808
        %v1714 = vunpack.c.0.s8 %v1713
        %v1715 = vlaneseq
        %v1716 = vshrl.u32 %v1715, 7
        %v1717 = vsub.s32 %v1714, %v1716
        %v1718 = vrot.slane %v1704, %v1717
        %v1719 = vcombine.high %v1711, %v1711
        %1720 = vrot.lane.b32.xlu0 %v1711, 46
        %v1721 = vpop.permute.xlu0 %1720
        %1722 = vrot.lane.b32.xlu0 %v1719, 46
        %v1723 = vpop.permute.xlu0 %1722
        %1724 = vrot.lane.b32.xlu0 %v1718, 46
        %v1725 = vpop.permute.xlu0 %1724
        %vm1726 = vcmask 375808
        %v1727 = vsel %vm1726, %v1721, %v1723
        %v1728 = vsel %vm1726, %v1723, %v1725
        %v1731 = vmul.f32 %v1701, %v1727
        %v1732 = vmul.f32 %v1701, %v1728
        %v1733 = vadd.f32 %v1731, 0.0
        %v1734 = vadd.f32 %v1732, 0.0
        %v1735 = vld [vmem:[#allocation2] sm:$0x3f]
        %v1736 = vld [vmem:[#allocation3] sm:$0x3]
        %1738 = vset.pattern.permute.xlu0 12
        %1739 = vperm.xlu0 %1738, %v1736
        %v1740 = vpop.permute.xlu0 %1739
        %v1743 = vcombine.high %v1735, %v1735
        %v1745 = vunpack.c.l.s4 1983009808
        %v1746 = vunpack.c.0.s8 %v1745
        %v1747 = vlaneseq
        %v1748 = vshrl.u32 %v1747, 7
        %v1749 = vsub.s32 %v1746, %v1748
        %v1750 = vrot.slane %v1735, %v1749
        %v1752 = vunpack.c.l.s4 1983009808
        %v1753 = vunpack.c.0.s8 %v1752
        %v1754 = vlaneseq
        %v1755 = vshrl.u32 %v1754, 7
        %v1756 = vsub.s32 %v1753, %v1755
        %v1757 = vrot.slane %v1743, %v1756
        %v1758 = vcombine.high %v1750, %v1750
        %1759 = vrot.lane.b32.xlu0 %v1750, 30
        %v1760 = vpop.permute.xlu0 %1759
        %1761 = vrot.lane.b32.xlu0 %v1758, 30
        %v1762 = vpop.permute.xlu0 %1761
        %1763 = vrot.lane.b32.xlu0 %v1757, 30
        %v1764 = vpop.permute.xlu0 %1763
        %vm1765 = vcmask 244736
        %v1766 = vsel %vm1765, %v1760, %v1762
        %v1767 = vsel %vm1765, %v1762, %v1764
        %v1770 = vmul.f32 %v1740, %v1766
        %v1771 = vmul.f32 %v1740, %v1767
        %v1772 = vadd.f32 %v1733, %v1770
        %v1773 = vadd.f32 %v1734, %v1771
        %v1774 = vld [vmem:[#allocation2] sm:$0x3f]
        %v1775 = vld [vmem:[#allocation3] sm:$0x3]
        %1777 = vset.pattern.permute.xlu0 19
        %1778 = vperm.xlu0 %1777, %v1775
        %v1779 = vpop.permute.xlu0 %1778
        %v1782 = vcombine.high %v1774, %v1774
        %v1784 = vunpack.c.l.s4 1983009808
        %v1785 = vunpack.c.0.s8 %v1784
        %v1786 = vlaneseq
        %v1787 = vshrl.u32 %v1786, 7
        %v1788 = vsub.s32 %v1785, %v1787
        %v1789 = vrot.slane %v1774, %v1788
        %v1791 = vunpack.c.l.s4 1983009808
        %v1792 = vunpack.c.0.s8 %v1791
        %v1793 = vlaneseq
        %v1794 = vshrl.u32 %v1793, 7
        %v1795 = vsub.s32 %v1792, %v1794
        %v1796 = vrot.slane %v1782, %v1795
        %v1797 = vcombine.high %v1789, %v1789
        %1798 = vrot.lane.b32.xlu0 %v1789, 14
        %v1799 = vpop.permute.xlu0 %1798
        %1800 = vrot.lane.b32.xlu0 %v1797, 14
        %v1801 = vpop.permute.xlu0 %1800
        %1802 = vrot.lane.b32.xlu0 %v1796, 14
        %v1803 = vpop.permute.xlu0 %1802
        %vm1804 = vcmask 113664
        %v1805 = vsel %vm1804, %v1799, %v1801
        %v1806 = vsel %vm1804, %v1801, %v1803
        %v1809 = vmul.f32 %v1779, %v1805
        %v1810 = vmul.f32 %v1779, %v1806
        %v1811 = vadd.f32 %v1772, %v1809
        %v1812 = vadd.f32 %v1773, %v1810
        %v1813 = vld [vmem:[#allocation2 + $0x2] sm:$0x3f]
        %v1814 = vld [vmem:[#allocation3] sm:$0x3]
        %1816 = vset.pattern.permute.xlu0 26
        %1817 = vperm.xlu0 %1816, %v1814
        %v1818 = vpop.permute.xlu0 %1817
        %v1821 = vcombine.high %v1813, %v1813
        %v1823 = vunpack.c.l.s4 1983009808
        %v1824 = vunpack.c.0.s8 %v1823
        %v1825 = vlaneseq
        %v1826 = vshrl.u32 %v1825, 7
        %v1827 = vsub.s32 %v1824, %v1826
        %v1828 = vrot.slane %v1813, %v1827
        %v1830 = vunpack.c.l.s4 1983009808
        %v1831 = vunpack.c.0.s8 %v1830
        %v1832 = vlaneseq
        %v1833 = vshrl.u32 %v1832, 7
        %v1834 = vsub.s32 %v1831, %v1833
        %v1835 = vrot.slane %v1821, %v1834
        %v1836 = vcombine.high %v1828, %v1828
        %1837 = vrot.lane.b32.xlu0 %v1828, 126
        %v1838 = vpop.permute.xlu0 %1837
        %1839 = vrot.lane.b32.xlu0 %v1836, 126
        %v1840 = vpop.permute.xlu0 %1839
        %1841 = vrot.lane.b32.xlu0 %v1835, 126
        %v1842 = vpop.permute.xlu0 %1841
        %vm1843 = vcmask 1031168
        %v1844 = vsel %vm1843, %v1838, %v1840
        %v1845 = vsel %vm1843, %v1840, %v1842
        %v1848 = vmul.f32 %v1818, %v1844
        %v1849 = vmul.f32 %v1818, %v1845
        %v1850 = vadd.f32 %v1811, %v1848
        %v1851 = vadd.f32 %v1812, %v1849
        %v1852 = vld [vmem:[#allocation2 + $0x2] sm:$0x3f]
        %v1853 = vld [vmem:[#allocation3] sm:$0x3]
        %1855 = vset.pattern.permute.xlu0 33
        %1856 = vperm.xlu0 %1855, %v1853
        %v1857 = vpop.permute.xlu0 %1856
        %v1860 = vcombine.high %v1852, %v1852
        %v1862 = vunpack.c.l.s4 1983009808
        %v1863 = vunpack.c.0.s8 %v1862
        %v1864 = vlaneseq
        %v1865 = vshrl.u32 %v1864, 7
        %v1866 = vsub.s32 %v1863, %v1865
        %v1867 = vrot.slane %v1852, %v1866
        %v1869 = vunpack.c.l.s4 1983009808
        %v1870 = vunpack.c.0.s8 %v1869
        %v1871 = vlaneseq
        %v1872 = vshrl.u32 %v1871, 7
        %v1873 = vsub.s32 %v1870, %v1872
        %v1874 = vrot.slane %v1860, %v1873
        %v1875 = vcombine.high %v1867, %v1867
        %1876 = vrot.lane.b32.xlu0 %v1867, 110
        %v1877 = vpop.permute.xlu0 %1876
        %1878 = vrot.lane.b32.xlu0 %v1875, 110
        %v1879 = vpop.permute.xlu0 %1878
        %1880 = vrot.lane.b32.xlu0 %v1874, 110
        %v1881 = vpop.permute.xlu0 %1880
        %vm1882 = vcmask 900096
        %v1883 = vsel %vm1882, %v1877, %v1879
        %v1884 = vsel %vm1882, %v1879, %v1881
        %v1887 = vmul.f32 %v1857, %v1883
        %v1888 = vmul.f32 %v1857, %v1884
        %v1889 = vadd.f32 %v1850, %v1887
        %v1890 = vadd.f32 %v1851, %v1888
        %v1891 = vld [vmem:[#allocation2 + $0x2] sm:$0x3f]
        %v1892 = vld [vmem:[#allocation3] sm:$0x3]
        %1894 = vset.pattern.permute.xlu0 40
        %1895 = vperm.xlu0 %1894, %v1892
        %v1896 = vpop.permute.xlu0 %1895
        %v1899 = vcombine.high %v1891, %v1891
        %v1901 = vunpack.c.l.s4 1983009808
        %v1902 = vunpack.c.0.s8 %v1901
        %v1903 = vlaneseq
        %v1904 = vshrl.u32 %v1903, 7
        %v1905 = vsub.s32 %v1902, %v1904
        %v1906 = vrot.slane %v1891, %v1905
        %v1908 = vunpack.c.l.s4 1983009808
        %v1909 = vunpack.c.0.s8 %v1908
        %v1910 = vlaneseq
        %v1911 = vshrl.u32 %v1910, 7
        %v1912 = vsub.s32 %v1909, %v1911
        %v1913 = vrot.slane %v1899, %v1912
        %v1914 = vcombine.high %v1906, %v1906
        %1915 = vrot.lane.b32.xlu0 %v1906, 94
        %v1916 = vpop.permute.xlu0 %1915
        %1917 = vrot.lane.b32.xlu0 %v1914, 94
        %v1918 = vpop.permute.xlu0 %1917
        %1919 = vrot.lane.b32.xlu0 %v1913, 94
        %v1920 = vpop.permute.xlu0 %1919
        %vm1921 = vcmask 769024
        %v1922 = vsel %vm1921, %v1916, %v1918
        %v1923 = vsel %vm1921, %v1918, %v1920
        %v1926 = vmul.f32 %v1896, %v1922
        %v1927 = vmul.f32 %v1896, %v1923
        %v1928 = vadd.f32 %v1889, %v1926
        %v1929 = vadd.f32 %v1890, %v1927
        %v1930 = vld [vmem:[#allocation2 + $0x2] sm:$0x3f]
        %v1931 = vld [vmem:[#allocation3] sm:$0x3]
        %1933 = vset.pattern.permute.xlu0 47
        %1934 = vperm.xlu0 %1933, %v1931
        %v1935 = vpop.permute.xlu0 %1934
        %v1938 = vcombine.high %v1930, %v1930
        %v1940 = vunpack.c.l.s4 1983009808
        %v1941 = vunpack.c.0.s8 %v1940
        %v1942 = vlaneseq
        %v1943 = vshrl.u32 %v1942, 7
        %v1944 = vsub.s32 %v1941, %v1943
        %v1945 = vrot.slane %v1930, %v1944
        %v1947 = vunpack.c.l.s4 1983009808
        %v1948 = vunpack.c.0.s8 %v1947
        %v1949 = vlaneseq
        %v1950 = vshrl.u32 %v1949, 7
        %v1951 = vsub.s32 %v1948, %v1950
        %v1952 = vrot.slane %v1938, %v1951
        %v1953 = vcombine.high %v1945, %v1945
        %1954 = vrot.lane.b32.xlu0 %v1945, 78
        %v1955 = vpop.permute.xlu0 %1954
        %1956 = vrot.lane.b32.xlu0 %v1953, 78
        %v1957 = vpop.permute.xlu0 %1956
        %1958 = vrot.lane.b32.xlu0 %v1952, 78
        %v1959 = vpop.permute.xlu0 %1958
        %vm1960 = vcmask 637952
        %v1961 = vsel %vm1960, %v1955, %v1957
        %v1962 = vsel %vm1960, %v1957, %v1959
        %v1965 = vmul.f32 %v1935, %v1961
        %v1966 = vmul.f32 %v1935, %v1962
        %v1967 = vadd.f32 %v1928, %v1965
        %v1968 = vadd.f32 %v1929, %v1966
        %s1969 = scalar_lea.vmem [#allocation6], 5
        %v1970 = vld [vmem:[%s1969] ss:$8 sm:$0x3]
        %v1972 = vlaneseq
        %v1973 = vshrl.u32 %v1972, 7
        %v1974 = vsub.s32 0, %v1973
        %v1975 = vrot.slane %v1970, %v1974
        %v1976 = vlaneseq
        %v1977 = vshrl.u32 %v1976, 7
        %v1978 = vsub.s32 1, %v1977
        %v1979 = vrot.slane %v1970, %v1978
        %v1982 = vmul.f32 %v1967, %v1975
        %v1983 = vmul.f32 %v1968, %v1979
        %v1984 = vadd.f32 %v1694, %v1982
        %v1985 = vadd.f32 %v1695, %v1983
        %v1986 = vld [vmem:[#allocation2] sm:$0x3f]
        %v1987 = vld [vmem:[#allocation3] sm:$0x3]
        %1989 = vset.pattern.permute.xlu0 6
        %1990 = vperm.xlu0 %1989, %v1987
        %v1991 = vpop.permute.xlu0 %1990
        %v1994 = vcombine.high %v1986, %v1986
        %v1996 = vunpack.c.l.s4 1983009808
        %v1997 = vunpack.c.0.s8 %v1996
        %v1998 = vlaneseq
        %v1999 = vshrl.u32 %v1998, 7
        %v2000 = vsub.s32 %v1997, %v1999
        %v2001 = vrot.slane %v1986, %v2000
        %v2003 = vunpack.c.l.s4 1983009808
        %v2004 = vunpack.c.0.s8 %v2003
        %v2005 = vlaneseq
        %v2006 = vshrl.u32 %v2005, 7
        %v2007 = vsub.s32 %v2004, %v2006
        %v2008 = vrot.slane %v1994, %v2007
        %v2009 = vcombine.high %v2001, %v2001
        %2010 = vrot.lane.b32.xlu0 %v2001, 45
        %v2011 = vpop.permute.xlu0 %2010
        %2012 = vrot.lane.b32.xlu0 %v2009, 45
        %v2013 = vpop.permute.xlu0 %2012
        %2014 = vrot.lane.b32.xlu0 %v2008, 45
        %v2015 = vpop.permute.xlu0 %2014
        %vm2016 = vcmask 367616
        %v2017 = vsel %vm2016, %v2011, %v2013
        %v2018 = vsel %vm2016, %v2013, %v2015
        %v2021 = vmul.f32 %v1991, %v2017
        %v2022 = vmul.f32 %v1991, %v2018
        %v2023 = vadd.f32 %v2021, 0.0
        %v2024 = vadd.f32 %v2022, 0.0
        %v2025 = vld [vmem:[#allocation2] sm:$0x3f]
        %v2026 = vld [vmem:[#allocation3] sm:$0x3]
        %2028 = vset.pattern.permute.xlu0 13
        %2029 = vperm.xlu0 %2028, %v2026
        %v2030 = vpop.permute.xlu0 %2029
        %v2033 = vcombine.high %v2025, %v2025
        %v2035 = vunpack.c.l.s4 1983009808
        %v2036 = vunpack.c.0.s8 %v2035
        %v2037 = vlaneseq
        %v2038 = vshrl.u32 %v2037, 7
        %v2039 = vsub.s32 %v2036, %v2038
        %v2040 = vrot.slane %v2025, %v2039
        %v2042 = vunpack.c.l.s4 1983009808
        %v2043 = vunpack.c.0.s8 %v2042
        %v2044 = vlaneseq
        %v2045 = vshrl.u32 %v2044, 7
        %v2046 = vsub.s32 %v2043, %v2045
        %v2047 = vrot.slane %v2033, %v2046
        %v2048 = vcombine.high %v2040, %v2040
        %2049 = vrot.lane.b32.xlu0 %v2040, 29
        %v2050 = vpop.permute.xlu0 %2049
        %2051 = vrot.lane.b32.xlu0 %v2048, 29
        %v2052 = vpop.permute.xlu0 %2051
        %2053 = vrot.lane.b32.xlu0 %v2047, 29
        %v2054 = vpop.permute.xlu0 %2053
        %vm2055 = vcmask 236544
        %v2056 = vsel %vm2055, %v2050, %v2052
        %v2057 = vsel %vm2055, %v2052, %v2054
        %v2060 = vmul.f32 %v2030, %v2056
        %v2061 = vmul.f32 %v2030, %v2057
        %v2062 = vadd.f32 %v2023, %v2060
        %v2063 = vadd.f32 %v2024, %v2061
        %v2064 = vld [vmem:[#allocation2] sm:$0x3f]
        %v2065 = vld [vmem:[#allocation3] sm:$0x3]
        %2067 = vset.pattern.permute.xlu0 20
        %2068 = vperm.xlu0 %2067, %v2065
        %v2069 = vpop.permute.xlu0 %2068
        %v2072 = vcombine.high %v2064, %v2064
        %v2074 = vunpack.c.l.s4 1983009808
        %v2075 = vunpack.c.0.s8 %v2074
        %v2076 = vlaneseq
        %v2077 = vshrl.u32 %v2076, 7
        %v2078 = vsub.s32 %v2075, %v2077
        %v2079 = vrot.slane %v2064, %v2078
        %v2081 = vunpack.c.l.s4 1983009808
        %v2082 = vunpack.c.0.s8 %v2081
        %v2083 = vlaneseq
        %v2084 = vshrl.u32 %v2083, 7
        %v2085 = vsub.s32 %v2082, %v2084
        %v2086 = vrot.slane %v2072, %v2085
        %v2087 = vcombine.high %v2079, %v2079
        %2088 = vrot.lane.b32.xlu0 %v2079, 13
        %v2089 = vpop.permute.xlu0 %2088
        %2090 = vrot.lane.b32.xlu0 %v2087, 13
        %v2091 = vpop.permute.xlu0 %2090
        %2092 = vrot.lane.b32.xlu0 %v2086, 13
        %v2093 = vpop.permute.xlu0 %2092
        %vm2094 = vcmask 105472
        %v2095 = vsel %vm2094, %v2089, %v2091
        %v2096 = vsel %vm2094, %v2091, %v2093
        %v2099 = vmul.f32 %v2069, %v2095
        %v2100 = vmul.f32 %v2069, %v2096
        %v2101 = vadd.f32 %v2062, %v2099
        %v2102 = vadd.f32 %v2063, %v2100
        %v2103 = vld [vmem:[#allocation2 + $0x2] sm:$0x3f]
        %v2104 = vld [vmem:[#allocation3] sm:$0x3]
        %2106 = vset.pattern.permute.xlu0 27
        %2107 = vperm.xlu0 %2106, %v2104
        %v2108 = vpop.permute.xlu0 %2107
        %v2111 = vcombine.high %v2103, %v2103
        %v2113 = vunpack.c.l.s4 1983009808
        %v2114 = vunpack.c.0.s8 %v2113
        %v2115 = vlaneseq
        %v2116 = vshrl.u32 %v2115, 7
        %v2117 = vsub.s32 %v2114, %v2116
        %v2118 = vrot.slane %v2103, %v2117
        %v2120 = vunpack.c.l.s4 1983009808
        %v2121 = vunpack.c.0.s8 %v2120
        %v2122 = vlaneseq
        %v2123 = vshrl.u32 %v2122, 7
        %v2124 = vsub.s32 %v2121, %v2123
        %v2125 = vrot.slane %v2111, %v2124
        %v2126 = vcombine.high %v2118, %v2118
        %2127 = vrot.lane.b32.xlu0 %v2118, 125
        %v2128 = vpop.permute.xlu0 %2127
        %2129 = vrot.lane.b32.xlu0 %v2126, 125
        %v2130 = vpop.permute.xlu0 %2129
        %2131 = vrot.lane.b32.xlu0 %v2125, 125
        %v2132 = vpop.permute.xlu0 %2131
        %vm2133 = vcmask 1022976
        %v2134 = vsel %vm2133, %v2128, %v2130
        %v2135 = vsel %vm2133, %v2130, %v2132
        %v2138 = vmul.f32 %v2108, %v2134
        %v2139 = vmul.f32 %v2108, %v2135
        %v2140 = vadd.f32 %v2101, %v2138
        %v2141 = vadd.f32 %v2102, %v2139
        %v2142 = vld [vmem:[#allocation2 + $0x2] sm:$0x3f]
        %v2143 = vld [vmem:[#allocation3] sm:$0x3]
        %2145 = vset.pattern.permute.xlu0 34
        %2146 = vperm.xlu0 %2145, %v2143
        %v2147 = vpop.permute.xlu0 %2146
        %v2150 = vcombine.high %v2142, %v2142
        %v2152 = vunpack.c.l.s4 1983009808
        %v2153 = vunpack.c.0.s8 %v2152
        %v2154 = vlaneseq
        %v2155 = vshrl.u32 %v2154, 7
        %v2156 = vsub.s32 %v2153, %v2155
        %v2157 = vrot.slane %v2142, %v2156
        %v2159 = vunpack.c.l.s4 1983009808
        %v2160 = vunpack.c.0.s8 %v2159
        %v2161 = vlaneseq
        %v2162 = vshrl.u32 %v2161, 7
        %v2163 = vsub.s32 %v2160, %v2162
        %v2164 = vrot.slane %v2150, %v2163
        %v2165 = vcombine.high %v2157, %v2157
        %2166 = vrot.lane.b32.xlu0 %v2157, 109
        %v2167 = vpop.permute.xlu0 %2166
        %2168 = vrot.lane.b32.xlu0 %v2165, 109
        %v2169 = vpop.permute.xlu0 %2168
        %2170 = vrot.lane.b32.xlu0 %v2164, 109
        %v2171 = vpop.permute.xlu0 %2170
        %vm2172 = vcmask 891904
        %v2173 = vsel %vm2172, %v2167, %v2169
        %v2174 = vsel %vm2172, %v2169, %v2171
        %v2177 = vmul.f32 %v2147, %v2173
        %v2178 = vmul.f32 %v2147, %v2174
        %v2179 = vadd.f32 %v2140, %v2177
        %v2180 = vadd.f32 %v2141, %v2178
        %v2181 = vld [vmem:[#allocation2 + $0x2] sm:$0x3f]
        %v2182 = vld [vmem:[#allocation3] sm:$0x3]
        %2184 = vset.pattern.permute.xlu0 41
        %2185 = vperm.xlu0 %2184, %v2182
        %v2186 = vpop.permute.xlu0 %2185
        %v2189 = vcombine.high %v2181, %v2181
        %v2191 = vunpack.c.l.s4 1983009808
        %v2192 = vunpack.c.0.s8 %v2191
        %v2193 = vlaneseq
        %v2194 = vshrl.u32 %v2193, 7
        %v2195 = vsub.s32 %v2192, %v2194
        %v2196 = vrot.slane %v2181, %v2195
        %v2198 = vunpack.c.l.s4 1983009808
        %v2199 = vunpack.c.0.s8 %v2198
        %v2200 = vlaneseq
        %v2201 = vshrl.u32 %v2200, 7
        %v2202 = vsub.s32 %v2199, %v2201
        %v2203 = vrot.slane %v2189, %v2202
        %v2204 = vcombine.high %v2196, %v2196
        %2205 = vrot.lane.b32.xlu0 %v2196, 93
        %v2206 = vpop.permute.xlu0 %2205
        %2207 = vrot.lane.b32.xlu0 %v2204, 93
        %v2208 = vpop.permute.xlu0 %2207
        %2209 = vrot.lane.b32.xlu0 %v2203, 93
        %v2210 = vpop.permute.xlu0 %2209
        %vm2211 = vcmask 760832
        %v2212 = vsel %vm2211, %v2206, %v2208
        %v2213 = vsel %vm2211, %v2208, %v2210
        %v2216 = vmul.f32 %v2186, %v2212
        %v2217 = vmul.f32 %v2186, %v2213
        %v2218 = vadd.f32 %v2179, %v2216
        %v2219 = vadd.f32 %v2180, %v2217
        %v2220 = vld [vmem:[#allocation2 + $0x2] sm:$0x3f]
        %v2221 = vld [vmem:[#allocation3] sm:$0x3]
        %2223 = vset.pattern.permute.xlu0 48
        %2224 = vperm.xlu0 %2223, %v2221
        %v2225 = vpop.permute.xlu0 %2224
        %v2228 = vcombine.high %v2220, %v2220
        %v2230 = vunpack.c.l.s4 1983009808
        %v2231 = vunpack.c.0.s8 %v2230
        %v2232 = vlaneseq
        %v2233 = vshrl.u32 %v2232, 7
        %v2234 = vsub.s32 %v2231, %v2233
        %v2235 = vrot.slane %v2220, %v2234
        %v2237 = vunpack.c.l.s4 1983009808
        %v2238 = vunpack.c.0.s8 %v2237
        %v2239 = vlaneseq
        %v2240 = vshrl.u32 %v2239, 7
        %v2241 = vsub.s32 %v2238, %v2240
        %v2242 = vrot.slane %v2228, %v2241
        %v2243 = vcombine.high %v2235, %v2235
        %2244 = vrot.lane.b32.xlu0 %v2235, 77
        %v2245 = vpop.permute.xlu0 %2244
        %2246 = vrot.lane.b32.xlu0 %v2243, 77
        %v2247 = vpop.permute.xlu0 %2246
        %2248 = vrot.lane.b32.xlu0 %v2242, 77
        %v2249 = vpop.permute.xlu0 %2248
        %vm2250 = vcmask 629760
        %v2251 = vsel %vm2250, %v2245, %v2247
        %v2252 = vsel %vm2250, %v2247, %v2249
        %v2255 = vmul.f32 %v2225, %v2251
        %v2256 = vmul.f32 %v2225, %v2252
        %v2257 = vadd.f32 %v2218, %v2255
        %v2258 = vadd.f32 %v2219, %v2256
        %s2259 = scalar_lea.vmem [#allocation6], 6
        %v2260 = vld [vmem:[%s2259] ss:$8 sm:$0x3]
        %v2262 = vlaneseq
        %v2263 = vshrl.u32 %v2262, 7
        %v2264 = vsub.s32 0, %v2263
        %v2265 = vrot.slane %v2260, %v2264
        %v2266 = vlaneseq
        %v2267 = vshrl.u32 %v2266, 7
        %v2268 = vsub.s32 1, %v2267
        %v2269 = vrot.slane %v2260, %v2268
        %v2272 = vmul.f32 %v2257, %v2265
        %v2273 = vmul.f32 %v2258, %v2269
        %v2274 = vadd.f32 %v1984, %v2272
        %v2275 = vadd.f32 %v1985, %v2273
        %vm2276 = vcmask 1041408
        %v2277 = vsel %vm2276, %v2274, 0.0
        %v2278 = vrot.slane %v2277, 4
        %v2279 = vadd.f32 %v2277, %v2278
        %v2280 = vrot.slane %v2279, 2
        %v2281 = vadd.f32 %v2279, %v2280
        %v2282 = vrot.slane %v2281, 1
        %v2283 = vadd.f32 %v2281, %v2282
        %v2284 = vsel %vm2276, %v2275, 0.0
        %v2285 = vrot.slane %v2284, 4
        %v2286 = vadd.f32 %v2284, %v2285
        %v2287 = vrot.slane %v2286, 2
        %v2288 = vadd.f32 %v2286, %v2287
        %v2289 = vrot.slane %v2288, 1
        %v2290 = vadd.f32 %v2288, %v2289
        %v2291 = vxor.u32 %v2283, 2147483648
        %v2292 = vxor.u32 %v2290, 2147483648
        %v2293 = vmul.f32 %v2291, 1.442695
        %v2294 = vpow.pop %v2293
        %v2295 = vmul.f32 %v2292, 1.442695
        %v2296 = vpow.pop %v2295
        %v2297 = vadd.f32 %v2294, 1.0
        %v2298 = vadd.f32 %v2296, 1.0
        %v2299 = vrcp.pop %v2297
        %v2300 = vmul.f32 1.0, %v2299
        %v2301 = vrcp.pop %v2298
        %v2302 = vmul.f32 1.0, %v2301
        %v2303 = vld [vmem:[%s187] sm:$0xff]
        %v2306 = vcombine.low %v2300, %v2302
        %v2308 = vmul.f32 %v2303, %v2306
        %2309 = vst [vmem:[%s209] sm:$0xff] %v2308
        %s2310 = sand.u32 %s95, 1
        %s2311 = scalar_lea.sflag [#allocation5], %s2310
        %s2312 = sand.u32 %s95, 1
        %s2313 = smul.addr %s2312, 8
        %s2314 = scalar_lea.vmem [#allocation9], %s2313
        // Predicated region
        $region45: #{tpu_custom_call.1} parent=31 // pred_check
          %p2315 = pneg %p105
        $region46: #{tpu_custom_call.1} parent=31 // pred_check_branch
          %2317 = sbr.rel (%p2315) target = $region48
        $region47: #{tpu_custom_call.1} parent=31 // pred_region
          %s2319 = ssub.s32 128, 128
          %2320 = vsyncadd %s2311, %s2319
          %s2321 = smul.addr %s19, 2
          %s2322 = smul.addr %s2321, 64
          %s2323 = scalar_lea.hbm %s3, %s2322
          %s2325 = sshll.u32 %s2314, 4
          %s2326 = int_to_ptr.vmem [resolvable:$true] %s2325
          %2328 = dma.vmem_to_hbm [thread:$0]  %s2326, 128, %s2323, %s2311
        $region48: #{tpu_custom_call.1} parent=31 // pred_fallthru
          _
      $region32: #{tpu_custom_call.1} parent=5 // pred_fallthru
        _
      %p2329 = scmp.le.s32.totalorder 2, %s14
      // Predicated region
      $region49: #{tpu_custom_call.1} parent=5 // pred_check
        %p2330 = pneg %p2329
      $region50: #{tpu_custom_call.1} parent=5 // pred_check_branch
        %2332 = sbr.rel (%p2330) target = $region52
      $region51: #{tpu_custom_call.1} parent=5 // pred_region
        %s2333 = ssub.s32 %s14, 2
        // Predicated region
        $region53: #{tpu_custom_call.1} parent=51 // pred_check
          %p2334 = pneg %p111
        $region54: #{tpu_custom_call.1} parent=51 // pred_check_branch
          %2336 = sbr.rel (%p2334) target = $region56
        $region55: #{tpu_custom_call.1} parent=51 // pred_region
          %s2337 = sand.u32 %s96, 1
          %s2338 = scalar_lea.sflag [#allocation5], %s2337
          %s2339 = sand.u32 %s96, 1
          %s2340 = smul.addr %s2339, 8
          %s2341 = scalar_lea.vmem [#allocation9], %s2340
          %2342 = dma.done %s2338, 128
        $region56: #{tpu_custom_call.1} parent=51 // pred_fallthru
          _
      $region52: #{tpu_custom_call.1} parent=5 // pred_fallthru
        _
    $region6: #{tpu_custom_call.1} parent=1 // loop_footer
      %s18 = sadd.s32 1, %s14
    $region7: #{tpu_custom_call.1} parent=1 // loop_footer_branch
      %13 = sbr.rel target = $region3
    $region8: #{tpu_custom_call.1} parent=1 // loop_exit
      _
    %2343 = vsyncpa [#allocation4], 1
    %s2344 = scalar_lea.sflag [#allocation4], 1
    %2345 = vsyncpa %s2344, 1
    %2346 = vsyncpa [#allocation7], 1
    %2347 = vsyncpa [#allocation5], 1
    %s2348 = scalar_lea.sflag [#allocation5], 1
    %2349 = vsyncpa %s2348, 1

</llo_original>
